<compile_context>
chip_gen: v7x
topology: tpu7x:2x2x1
jax: 0.10.0
libtpu: 0.0.40
codegen_flags: <defaults>
</compile_context>

<pallas_src>
import functools

import jax
import jax.numpy as jnp
from jax.experimental import pallas as pl
from jax.experimental.pallas import tpu as pltpu


# ----------------------------------------------------------------------------
# Fused kernel factory (num_layers LSTM layers + FC head, one grid step per
# batch tile; the full sequence for that tile is processed inside the kernel).
# ----------------------------------------------------------------------------
def _make_fused_kernel(num_layers, T, B, H, unroll):
    def kernel(x_ref, *refs):
        # refs = [w_ih, w_hh, b] * num_layers, fc_w, fc_b, out_ref, zx, hseq
        layer_refs = refs[:3 * num_layers]
        fcw_ref, fcb_ref, out_ref, zx_ref, hseq_ref = refs[3 * num_layers:]

        def cell(z, c_prev):
            # Gate math in f32 (VPU/EUP); for 4H == 128 these are sub-vreg lane
            # slices which is fine -- the serial path is the W_hh matmul.
            i_g = jax.nn.sigmoid(z[:, 0 * H:1 * H])
            f_g = jax.nn.sigmoid(z[:, 1 * H:2 * H])
            g_g = jnp.tanh(z[:, 2 * H:3 * H])
            o_g = jax.nn.sigmoid(z[:, 3 * H:4 * H])
            c_new = f_g * c_prev + i_g * g_g
            return o_g * jnp.tanh(c_new), c_new

        def run_layer(inp_2d, wih_ref, whh_ref, b_ref, keep_seq):
            # Bulk input projection for ALL timesteps (hoisted out of the
            # recurrence): (T*B, in) @ (in, 4H) -> VMEM scratch, bias fused in.
            zx_ref[...] = (
                jnp.dot(inp_2d.astype(wih_ref.dtype), wih_ref[...],
                        preferred_element_type=jnp.float32)
                + b_ref[...])

            # Hoist the recurrent weight read out of the time loop.
            whh = whh_ref[...]

            def step(t, carry):
                h_prev, c_prev = carry
                row = pl.multiple_of(t * B, B)
                z = zx_ref[pl.ds(row, B), :] + jnp.dot(
                    h_prev.astype(whh.dtype), whh,
                    preferred_element_type=jnp.float32)
                h_new, c_new = cell(z, c_prev)
                if keep_seq:  # only non-final layers need the full h sequence
                    hseq_ref[pl.ds(row, B), :] = h_new
                return h_new, c_new

            zeros = jnp.zeros((B, H), jnp.float32)
            h_last, _ = jax.lax.fori_loop(0, T, step, (zeros, zeros),
                                          unroll=unroll)
            return h_last

        # Layer 0 consumes the (time-major) input block, flattened to (T*B, I).
        inp = x_ref[...].reshape(T * B, x_ref.shape[-1]).astype(jnp.float32)
        h_last = None
        for layer in range(num_layers):
            wih_ref, whh_ref, b_ref = layer_refs[3 * layer:3 * layer + 3]
            keep_seq = layer < num_layers - 1
            h_last = run_layer(inp, wih_ref, whh_ref, b_ref, keep_seq)
            if keep_seq:
                # TODO(synk): inter-layer dropout (train mode) would go here.
                inp = hseq_ref[...]

        # FC head fused into the same kernel: (B, H) @ (H, C) + b.
        out_ref[...] = (jnp.dot(h_last.astype(fcw_ref.dtype), fcw_ref[...],
                                preferred_element_type=jnp.float32)
                        + fcb_ref[...]).astype(out_ref.dtype)

    return kernel


# ----------------------------------------------------------------------------
# Wrapper (mirrors LSTMClassifier.forward, eval mode)
# ----------------------------------------------------------------------------
@functools.partial(jax.jit, static_argnames=("compute_dtype",))
def lstm_classifier_forward(x, layer_params, fc_w, fc_b,
                            compute_dtype=jnp.float32):
    if x.ndim == 2:                       # x.unsqueeze(1) equivalent
        x = x[:, None, :]
    B, T, I = x.shape
    H = layer_params[0][1].shape[0]       # w_hh is (H, 4H)
    H4 = 4 * H
    C = fc_w.shape[1]

    # Pad batch to a multiple of 8 sublanes so every (B, .) tile is full.
    B_pad = ((B + 7) // 8) * 8
    if B_pad != B:
        x = jnp.pad(x, ((0, B_pad - B), (0, 0), (0, 0)))
    # Time-major so each timestep is a contiguous, sublane-aligned (B, .) slab.
    x_tm = jnp.transpose(x, (1, 0, 2))    # (T, B_pad, I)

    # Optional batch-tile grid axis: 2 "parallel" tiles let v7x's second
    # TensorCore run half the batch's (independent) recurrence.
    b_tile = B_pad // 2 if (B_pad >= 16 and B_pad % 16 == 0) else B_pad
    grid = (B_pad // b_tile,)

    num_layers = len(layer_params)
    unroll = T <= 64                       # full unroll for short sequences

    cast_w = lambda w: w.astype(compute_dtype)   # bf16 weights on v6e/v7x
    flat_args = []
    in_specs = [pl.BlockSpec((T, b_tile, I), lambda b: (0, b, 0))]
    for (w_ih, w_hh, bias) in layer_params:
        flat_args += [cast_w(w_ih), cast_w(w_hh), bias]
        in_specs += [
            pl.BlockSpec(w_ih.shape, lambda b: (0, 0)),
            pl.BlockSpec(w_hh.shape, lambda b: (0, 0)),
            pl.BlockSpec(bias.shape, lambda b: (0, 0)),
        ]
    flat_args += [cast_w(fc_w), fc_b]
    in_specs += [pl.BlockSpec(fc_w.shape, lambda b: (0, 0)),
                 pl.BlockSpec(fc_b.shape, lambda b: (0, 0))]

    kernel = _make_fused_kernel(num_layers, T, b_tile, H, unroll)

    # Scratch: bulk X@W_ih for the whole tile, plus the h sequence only when a
    # second layer needs to consume it.
    hseq_rows = T * b_tile if num_layers > 1 else 8
    scratch_shapes = [
        pltpu.VMEM((T * b_tile, H4), jnp.float32),   # zx  (bulk x@W_ih + bias)
        pltpu.VMEM((hseq_rows, H), jnp.float32),     # h sequence (inter-layer)
    ]

    # Only raise the scoped-VMEM limit when the kernel actually needs it
    # (double-buffered input/weight blocks + output + scratch, with headroom);
    # small configs stay on the platform default fast path.
    vmem_needed = 2 * T * b_tile * I * x_tm.dtype.itemsize
    for a in flat_args:
        vmem_needed += 2 * a.size * a.dtype.itemsize
    vmem_needed += 2 * b_tile * C * 4
    vmem_needed += T * b_tile * H4 * 4 + hseq_rows * H * 4
    cp_kwargs = dict(dimension_semantics=("parallel",))
    if vmem_needed > 24 * 1024 * 1024:
        cp_kwargs["vmem_limit_bytes"] = min(
            int(1.5 * vmem_needed), 64 * 1024 * 1024)

    out = pl.pallas_call(
        kernel,
        out_shape=jax.ShapeDtypeStruct((B_pad, C), jnp.float32),
        grid_spec=pltpu.PrefetchScalarGridSpec(
            num_scalar_prefetch=0,
            grid=grid,
            in_specs=in_specs,
            out_specs=pl.BlockSpec((b_tile, C), lambda b: (b, 0)),
            scratch_shapes=scratch_shapes,
        ),
        compiler_params=pltpu.CompilerParams(**cp_kwargs),
    )(x_tm, *flat_args)

    return out[:B]


# ----------------------------------------------------------------------------
# Pure-JAX reference (for correctness check)
# ----------------------------------------------------------------------------
def _reference_forward(x, layer_params, fc_w, fc_b):
    hi = jax.lax.Precision.HIGHEST
    if x.ndim == 2:
        x = x[:, None, :]
    B = x.shape[0]
    seq = jnp.transpose(x, (1, 0, 2))          # (T, B, I)
    for (w_ih, w_hh, bias) in layer_params:
        H = w_hh.shape[0]

        def step(carry, x_t, w_ih=w_ih, w_hh=w_hh, bias=bias, H=H):
            h, c = carry
            z = (jnp.dot(x_t, w_ih, precision=hi)
                 + jnp.dot(h, w_hh, precision=hi) + bias)
            i = jax.nn.sigmoid(z[:, 0 * H:1 * H])
            f = jax.nn.sigmoid(z[:, 1 * H:2 * H])
            g = jnp.tanh(z[:, 2 * H:3 * H])
            o = jax.nn.sigmoid(z[:, 3 * H:4 * H])
            c = f * c + i * g
            h = o * jnp.tanh(c)
            return (h, c), h

        init = (jnp.zeros((B, H), jnp.float32), jnp.zeros((B, H), jnp.float32))
        _, seq = jax.lax.scan(step, init, seq)
    return jnp.dot(seq[-1], fc_w, precision=hi) + fc_b


# ----------------------------------------------------------------------------
# Parameter init (matches PyTorch __init__: xavier_uniform_ weights, zero biases)
# ----------------------------------------------------------------------------
def xavier_uniform(key, shape_torch):
    fan_out, fan_in = shape_torch
    bound = (6.0 / (fan_in + fan_out)) ** 0.5
    return jax.random.uniform(key, shape_torch, jnp.float32, -bound, bound)


def init_params(key, input_size, hidden_size, num_layers, num_classes):
    layers = []
    for layer in range(num_layers):
        in_sz = input_size if layer == 0 else hidden_size
        key, k1, k2 = jax.random.split(key, 3)
        w_ih = xavier_uniform(k1, (4 * hidden_size, in_sz)).T          # (in, 4H)
        w_hh = xavier_uniform(k2, (4 * hidden_size, hidden_size)).T    # (H, 4H)
        bias = jnp.zeros((1, 4 * hidden_size), jnp.float32)            # b_ih + b_hh
        layers.append((w_ih, w_hh, bias))
    key, kf = jax.random.split(key)
    fc_w = xavier_uniform(kf, (num_classes, hidden_size)).T            # (H, C)
    fc_b = jnp.zeros((1, num_classes), jnp.float32)
    return tuple(layers), fc_w, fc_b


if __name__ == "__main__":
    batch, seq, input_size = 2, 8, 16
    hidden_size, num_layers, num_classes = 32, 2, 3

    key = jax.random.PRNGKey(0)
    key, kx = jax.random.split(key)
    x = jax.random.normal(kx, (batch, seq, input_size), jnp.float32)

    layer_params, fc_w, fc_b = init_params(
        key, input_size, hidden_size, num_layers, num_classes)

    # f32 path (exact forward semantics)
    out = lstm_classifier_forward(x, layer_params, fc_w, fc_b)
    out = jax.block_until_ready(out)

    ref = _reference_forward(x, layer_params, fc_w, fc_b)

    assert out.shape == (batch, num_classes)
    assert bool(jnp.all(jnp.isfinite(out)))
    assert bool(jnp.allclose(out, ref, atol=5e-3, rtol=5e-3))

    # bf16-weight path (v6e/v7x MXU): f32 state/gates, looser tolerance.
    out_bf16 = lstm_classifier_forward(x, layer_params, fc_w, fc_b,
                                       compute_dtype=jnp.bfloat16)
    out_bf16 = jax.block_until_ready(out_bf16)
    assert bool(jnp.all(jnp.isfinite(out_bf16)))
    assert bool(jnp.allclose(out_bf16, ref, atol=5e-2, rtol=5e-2))

    print("KERNEL_OK")
</pallas_src>

<mosaic_0001>
module attributes {stable_mosaic.version = 11 : i64} {
  func.func @kernel(%arg0: i32, %arg1: memref<8x8x16xf32, #tpu.memory_space<vmem>>, %arg2: memref<16x128xf32, #tpu.memory_space<vmem>>, %arg3: memref<32x128xf32, #tpu.memory_space<vmem>>, %arg4: memref<1x128xf32, #tpu.memory_space<vmem>>, %arg5: memref<32x128xf32, #tpu.memory_space<vmem>>, %arg6: memref<32x128xf32, #tpu.memory_space<vmem>>, %arg7: memref<1x128xf32, #tpu.memory_space<vmem>>, %arg8: memref<32x3xf32, #tpu.memory_space<vmem>>, %arg9: memref<1x3xf32, #tpu.memory_space<vmem>>, %arg10: memref<8x3xf32, #tpu.memory_space<vmem>>, %arg11: memref<64x128xf32, #tpu.memory_space<vmem>>, %arg12: memref<64x32xf32, #tpu.memory_space<vmem>>) attributes {dimension_semantics = [#tpu.dimension_semantics<parallel>], iteration_bounds = array<i64: 1>, scalar_prefetch = 0 : i64, scratch_operands = 2 : i64, tpu.core_type = #tpu.core_type<tc>, window_params = [{transform_indices = @transform_0, window_bounds = array<i64: 8, 8, 16>}, {pipeline_mode = #tpu.pipeline_mode<synchronous>, transform_indices = @transform_1, window_bounds = array<i64: 16, 128>}, {pipeline_mode = #tpu.pipeline_mode<synchronous>, transform_indices = @transform_2, window_bounds = array<i64: 32, 128>}, {pipeline_mode = #tpu.pipeline_mode<synchronous>, transform_indices = @transform_3, window_bounds = array<i64: 1, 128>}, {pipeline_mode = #tpu.pipeline_mode<synchronous>, transform_indices = @transform_4, window_bounds = array<i64: 32, 128>}, {pipeline_mode = #tpu.pipeline_mode<synchronous>, transform_indices = @transform_5, window_bounds = array<i64: 32, 128>}, {pipeline_mode = #tpu.pipeline_mode<synchronous>, transform_indices = @transform_6, window_bounds = array<i64: 1, 128>}, {pipeline_mode = #tpu.pipeline_mode<synchronous>, transform_indices = @transform_7, window_bounds = array<i64: 32, 3>}, {pipeline_mode = #tpu.pipeline_mode<synchronous>, transform_indices = @transform_8, window_bounds = array<i64: 1, 3>}, {transform_indices = @transform_9, window_bounds = array<i64: 8, 3>}]} {
    %c0 = arith.constant 0 : index
    %c0_0 = arith.constant 0 : index
    %c0_1 = arith.constant 0 : index
    %0 = vector.load %arg1[%c0, %c0_0, %c0_1] : memref<8x8x16xf32, #tpu.memory_space<vmem>>, vector<8x8x16xf32>
    %1 = vector.shape_cast %0 : vector<8x8x16xf32> to vector<64x16xf32>
    %c0_2 = arith.constant 0 : index
    %c0_3 = arith.constant 0 : index
    %2 = vector.load %arg2[%c0_2, %c0_3] : memref<16x128xf32, #tpu.memory_space<vmem>>, vector<16x128xf32>
    %cst = arith.constant dense<0.000000e+00> : vector<64x128xf32>
    %3 = tpu.matmul %1, %2, %cst {dimension_numbers = #tpu.dot_dimension_numbers<[1], [0], [0], [1], [0, 0, 1, 1], [], []>} : vector<64x16xf32>, vector<16x128xf32>, vector<64x128xf32> -> vector<64x128xf32>
    %c0_4 = arith.constant 0 : index
    %c0_5 = arith.constant 0 : index
    %4 = vector.load %arg4[%c0_4, %c0_5] : memref<1x128xf32, #tpu.memory_space<vmem>>, vector<1x128xf32>
    %5 = vector.broadcast %4 : vector<1x128xf32> to vector<64x128xf32>
    %6 = arith.addf %3, %5 : vector<64x128xf32>
    %c0_6 = arith.constant 0 : index
    %c0_7 = arith.constant 0 : index
    %7 = vector.load %arg11[%c0_6, %c0_7] : memref<64x128xf32, #tpu.memory_space<vmem>>, vector<64x128xf32>
    tpu.vector_store %arg11[%c0_6, %c0_7], %6 {strides = array<i32>} : memref<64x128xf32, #tpu.memory_space<vmem>>, vector<64x128xf32>,
    %c0_8 = arith.constant 0 : index
    %c0_9 = arith.constant 0 : index
    %8 = vector.load %arg3[%c0_8, %c0_9] : memref<32x128xf32, #tpu.memory_space<vmem>>, vector<32x128xf32>
    %cst_10 = arith.constant 0.000000e+00 : f32
    %9 = vector.broadcast %cst_10 : f32 to vector<8x32xf32>
    %c0_i32 = arith.constant 0 : i32
    %c8_i32 = arith.constant 8 : i32
    %10 = arith.muli %c0_i32, %c8_i32 : i32
    %11 = tpu.assume_multiple %10, 8 : i32
    %12 = arith.index_cast %11 : i32 to index
    %c0_11 = arith.constant 0 : index
    %13 = vector.load %arg11[%12, %c0_11] : memref<64x128xf32, #tpu.memory_space<vmem>>, vector<8x128xf32>
    %cst_12 = arith.constant dense<0.000000e+00> : vector<8x128xf32>
    %14 = tpu.matmul %9, %8, %cst_12 {dimension_numbers = #tpu.dot_dimension_numbers<[1], [0], [0], [1], [0, 0, 1, 1], [], []>} : vector<8x32xf32>, vector<32x128xf32>, vector<8x128xf32> -> vector<8x128xf32>
    %15 = arith.addf %13, %14 : vector<8x128xf32>
    %16 = vector.extract_strided_slice %15 {offsets = [0, 0], sizes = [8, 32], strides = [1, 1]} : vector<8x128xf32> to vector<8x32xf32>
    %17 = arith.negf %16 : vector<8x32xf32>
    %18 = math.exp %17 : vector<8x32xf32>
    %cst_13 = arith.constant 1.000000e+00 : f32
    %19 = vector.broadcast %cst_13 : f32 to vector<8x32xf32>
    %20 = arith.addf %19, %18 : vector<8x32xf32>
    %21 = arith.divf %19, %20 : vector<8x32xf32>
    %22 = vector.extract_strided_slice %15 {offsets = [0, 32], sizes = [8, 32], strides = [1, 1]} : vector<8x128xf32> to vector<8x32xf32>
    %23 = arith.negf %22 : vector<8x32xf32>
    %24 = math.exp %23 : vector<8x32xf32>
    %cst_14 = arith.constant 1.000000e+00 : f32
    %25 = vector.broadcast %cst_14 : f32 to vector<8x32xf32>
    %26 = arith.addf %25, %24 : vector<8x32xf32>
    %27 = arith.divf %25, %26 : vector<8x32xf32>
    %28 = vector.extract_strided_slice %15 {offsets = [0, 64], sizes = [8, 32], strides = [1, 1]} : vector<8x128xf32> to vector<8x32xf32>
    %29 = math.tanh %28 : vector<8x32xf32>
    %30 = vector.extract_strided_slice %15 {offsets = [0, 96], sizes = [8, 32], strides = [1, 1]} : vector<8x128xf32> to vector<8x32xf32>
    %31 = arith.negf %30 : vector<8x32xf32>
    %32 = math.exp %31 : vector<8x32xf32>
    %cst_15 = arith.constant 1.000000e+00 : f32
    %33 = vector.broadcast %cst_15 : f32 to vector<8x32xf32>
    %34 = arith.addf %33, %32 : vector<8x32xf32>
    %35 = arith.divf %33, %34 : vector<8x32xf32>
    %36 = arith.mulf %27, %9 : vector<8x32xf32>
    %37 = arith.mulf %21, %29 : vector<8x32xf32>
    %38 = arith.addf %36, %37 : vector<8x32xf32>
    %39 = math.tanh %38 : vector<8x32xf32>
    %40 = arith.mulf %35, %39 : vector<8x32xf32>
    %41 = arith.index_cast %11 : i32 to index
    %c0_16 = arith.constant 0 : index
    %42 = vector.load %arg12[%41, %c0_16] : memref<64x32xf32, #tpu.memory_space<vmem>>, vector<8x32xf32>
    tpu.vector_store %arg12[%41, %c0_16], %40 {strides = array<i32>} : memref<64x32xf32, #tpu.memory_space<vmem>>, vector<8x32xf32>,
    %c1_i32 = arith.constant 1 : i32
    %c8_i32_17 = arith.constant 8 : i32
    %43 = arith.muli %c1_i32, %c8_i32_17 : i32
    %44 = tpu.assume_multiple %43, 8 : i32
    %45 = arith.index_cast %44 : i32 to index
    %c0_18 = arith.constant 0 : index
    %46 = vector.load %arg11[%45, %c0_18] : memref<64x128xf32, #tpu.memory_space<vmem>>, vector<8x128xf32>
    %cst_19 = arith.constant dense<0.000000e+00> : vector<8x128xf32>
    %47 = tpu.matmul %40, %8, %cst_19 {dimension_numbers = #tpu.dot_dimension_numbers<[1], [0], [0], [1], [0, 0, 1, 1], [], []>} : vector<8x32xf32>, vector<32x128xf32>, vector<8x128xf32> -> vector<8x128xf32>
    %48 = arith.addf %46, %47 : vector<8x128xf32>
    %49 = vector.extract_strided_slice %48 {offsets = [0, 0], sizes = [8, 32], strides = [1, 1]} : vector<8x128xf32> to vector<8x32xf32>
    %50 = arith.negf %49 : vector<8x32xf32>
    %51 = math.exp %50 : vector<8x32xf32>
    %cst_20 = arith.constant 1.000000e+00 : f32
    %52 = vector.broadcast %cst_20 : f32 to vector<8x32xf32>
    %53 = arith.addf %52, %51 : vector<8x32xf32>
    %54 = arith.divf %52, %53 : vector<8x32xf32>
    %55 = vector.extract_strided_slice %48 {offsets = [0, 32], sizes = [8, 32], strides = [1, 1]} : vector<8x128xf32> to vector<8x32xf32>
    %56 = arith.negf %55 : vector<8x32xf32>
    %57 = math.exp %56 : vector<8x32xf32>
    %cst_21 = arith.constant 1.000000e+00 : f32
    %58 = vector.broadcast %cst_21 : f32 to vector<8x32xf32>
    %59 = arith.addf %58, %57 : vector<8x32xf32>
    %60 = arith.divf %58, %59 : vector<8x32xf32>
    %61 = vector.extract_strided_slice %48 {offsets = [0, 64], sizes = [8, 32], strides = [1, 1]} : vector<8x128xf32> to vector<8x32xf32>
    %62 = math.tanh %61 : vector<8x32xf32>
    %63 = vector.extract_strided_slice %48 {offsets = [0, 96], sizes = [8, 32], strides = [1, 1]} : vector<8x128xf32> to vector<8x32xf32>
    %64 = arith.negf %63 : vector<8x32xf32>
    %65 = math.exp %64 : vector<8x32xf32>
    %cst_22 = arith.constant 1.000000e+00 : f32
    %66 = vector.broadcast %cst_22 : f32 to vector<8x32xf32>
    %67 = arith.addf %66, %65 : vector<8x32xf32>
    %68 = arith.divf %66, %67 : vector<8x32xf32>
    %69 = arith.mulf %60, %38 : vector<8x32xf32>
    %70 = arith.mulf %54, %62 : vector<8x32xf32>
    %71 = arith.addf %69, %70 : vector<8x32xf32>
    %72 = math.tanh %71 : vector<8x32xf32>
    %73 = arith.mulf %68, %72 : vector<8x32xf32>
    %74 = arith.index_cast %44 : i32 to index
    %c0_23 = arith.constant 0 : index
    %75 = vector.load %arg12[%74, %c0_23] : memref<64x32xf32, #tpu.memory_space<vmem>>, vector<8x32xf32>
    tpu.vector_store %arg12[%74, %c0_23], %73 {strides = array<i32>} : memref<64x32xf32, #tpu.memory_space<vmem>>, vector<8x32xf32>,
    %c2_i32 = arith.constant 2 : i32
    %c8_i32_24 = arith.constant 8 : i32
    %76 = arith.muli %c2_i32, %c8_i32_24 : i32
    %77 = tpu.assume_multiple %76, 8 : i32
    %78 = arith.index_cast %77 : i32 to index
    %c0_25 = arith.constant 0 : index
    %79 = vector.load %arg11[%78, %c0_25] : memref<64x128xf32, #tpu.memory_space<vmem>>, vector<8x128xf32>
    %cst_26 = arith.constant dense<0.000000e+00> : vector<8x128xf32>
    %80 = tpu.matmul %73, %8, %cst_26 {dimension_numbers = #tpu.dot_dimension_numbers<[1], [0], [0], [1], [0, 0, 1, 1], [], []>} : vector<8x32xf32>, vector<32x128xf32>, vector<8x128xf32> -> vector<8x128xf32>
    %81 = arith.addf %79, %80 : vector<8x128xf32>
    %82 = vector.extract_strided_slice %81 {offsets = [0, 0], sizes = [8, 32], strides = [1, 1]} : vector<8x128xf32> to vector<8x32xf32>
    %83 = arith.negf %82 : vector<8x32xf32>
    %84 = math.exp %83 : vector<8x32xf32>
    %cst_27 = arith.constant 1.000000e+00 : f32
    %85 = vector.broadcast %cst_27 : f32 to vector<8x32xf32>
    %86 = arith.addf %85, %84 : vector<8x32xf32>
    %87 = arith.divf %85, %86 : vector<8x32xf32>
    %88 = vector.extract_strided_slice %81 {offsets = [0, 32], sizes = [8, 32], strides = [1, 1]} : vector<8x128xf32> to vector<8x32xf32>
    %89 = arith.negf %88 : vector<8x32xf32>
    %90 = math.exp %89 : vector<8x32xf32>
    %cst_28 = arith.constant 1.000000e+00 : f32
    %91 = vector.broadcast %cst_28 : f32 to vector<8x32xf32>
    %92 = arith.addf %91, %90 : vector<8x32xf32>
    %93 = arith.divf %91, %92 : vector<8x32xf32>
    %94 = vector.extract_strided_slice %81 {offsets = [0, 64], sizes = [8, 32], strides = [1, 1]} : vector<8x128xf32> to vector<8x32xf32>
    %95 = math.tanh %94 : vector<8x32xf32>
    %96 = vector.extract_strided_slice %81 {offsets = [0, 96], sizes = [8, 32], strides = [1, 1]} : vector<8x128xf32> to vector<8x32xf32>
    %97 = arith.negf %96 : vector<8x32xf32>
    %98 = math.exp %97 : vector<8x32xf32>
    %cst_29 = arith.constant 1.000000e+00 : f32
    %99 = vector.broadcast %cst_29 : f32 to vector<8x32xf32>
    %100 = arith.addf %99, %98 : vector<8x32xf32>
    %101 = arith.divf %99, %100 : vector<8x32xf32>
    %102 = arith.mulf %93, %71 : vector<8x32xf32>
    %103 = arith.mulf %87, %95 : vector<8x32xf32>
    %104 = arith.addf %102, %103 : vector<8x32xf32>
    %105 = math.tanh %104 : vector<8x32xf32>
    %106 = arith.mulf %101, %105 : vector<8x32xf32>
    %107 = arith.index_cast %77 : i32 to index
    %c0_30 = arith.constant 0 : index
    %108 = vector.load %arg12[%107, %c0_30] : memref<64x32xf32, #tpu.memory_space<vmem>>, vector<8x32xf32>
    tpu.vector_store %arg12[%107, %c0_30], %106 {strides = array<i32>} : memref<64x32xf32, #tpu.memory_space<vmem>>, vector<8x32xf32>,
    %c3_i32 = arith.constant 3 : i32
    %c8_i32_31 = arith.constant 8 : i32
    %109 = arith.muli %c3_i32, %c8_i32_31 : i32
    %110 = tpu.assume_multiple %109, 8 : i32
    %111 = arith.index_cast %110 : i32 to index
    %c0_32 = arith.constant 0 : index
    %112 = vector.load %arg11[%111, %c0_32] : memref<64x128xf32, #tpu.memory_space<vmem>>, vector<8x128xf32>
    %cst_33 = arith.constant dense<0.000000e+00> : vector<8x128xf32>
    %113 = tpu.matmul %106, %8, %cst_33 {dimension_numbers = #tpu.dot_dimension_numbers<[1], [0], [0], [1], [0, 0, 1, 1], [], []>} : vector<8x32xf32>, vector<32x128xf32>, vector<8x128xf32> -> vector<8x128xf32>
    %114 = arith.addf %112, %113 : vector<8x128xf32>
    %115 = vector.extract_strided_slice %114 {offsets = [0, 0], sizes = [8, 32], strides = [1, 1]} : vector<8x128xf32> to vector<8x32xf32>
    %116 = arith.negf %115 : vector<8x32xf32>
    %117 = math.exp %116 : vector<8x32xf32>
    %cst_34 = arith.constant 1.000000e+00 : f32
    %118 = vector.broadcast %cst_34 : f32 to vector<8x32xf32>
    %119 = arith.addf %118, %117 : vector<8x32xf32>
    %120 = arith.divf %118, %119 : vector<8x32xf32>
    %121 = vector.extract_strided_slice %114 {offsets = [0, 32], sizes = [8, 32], strides = [1, 1]} : vector<8x128xf32> to vector<8x32xf32>
    %122 = arith.negf %121 : vector<8x32xf32>
    %123 = math.exp %122 : vector<8x32xf32>
    %cst_35 = arith.constant 1.000000e+00 : f32
    %124 = vector.broadcast %cst_35 : f32 to vector<8x32xf32>
    %125 = arith.addf %124, %123 : vector<8x32xf32>
    %126 = arith.divf %124, %125 : vector<8x32xf32>
    %127 = vector.extract_strided_slice %114 {offsets = [0, 64], sizes = [8, 32], strides = [1, 1]} : vector<8x128xf32> to vector<8x32xf32>
    %128 = math.tanh %127 : vector<8x32xf32>
    %129 = vector.extract_strided_slice %114 {offsets = [0, 96], sizes = [8, 32], strides = [1, 1]} : vector<8x128xf32> to vector<8x32xf32>
    %130 = arith.negf %129 : vector<8x32xf32>
    %131 = math.exp %130 : vector<8x32xf32>
    %cst_36 = arith.constant 1.000000e+00 : f32
    %132 = vector.broadcast %cst_36 : f32 to vector<8x32xf32>
    %133 = arith.addf %132, %131 : vector<8x32xf32>
    %134 = arith.divf %132, %133 : vector<8x32xf32>
    %135 = arith.mulf %126, %104 : vector<8x32xf32>
    %136 = arith.mulf %120, %128 : vector<8x32xf32>
    %137 = arith.addf %135, %136 : vector<8x32xf32>
    %138 = math.tanh %137 : vector<8x32xf32>
    %139 = arith.mulf %134, %138 : vector<8x32xf32>
    %140 = arith.index_cast %110 : i32 to index
    %c0_37 = arith.constant 0 : index
    %141 = vector.load %arg12[%140, %c0_37] : memref<64x32xf32, #tpu.memory_space<vmem>>, vector<8x32xf32>
    tpu.vector_store %arg12[%140, %c0_37], %139 {strides = array<i32>} : memref<64x32xf32, #tpu.memory_space<vmem>>, vector<8x32xf32>,
    %c4_i32 = arith.constant 4 : i32
    %c8_i32_38 = arith.constant 8 : i32
    %142 = arith.muli %c4_i32, %c8_i32_38 : i32
    %143 = tpu.assume_multiple %142, 8 : i32
    %144 = arith.index_cast %143 : i32 to index
    %c0_39 = arith.constant 0 : index
    %145 = vector.load %arg11[%144, %c0_39] : memref<64x128xf32, #tpu.memory_space<vmem>>, vector<8x128xf32>
    %cst_40 = arith.constant dense<0.000000e+00> : vector<8x128xf32>
    %146 = tpu.matmul %139, %8, %cst_40 {dimension_numbers = #tpu.dot_dimension_numbers<[1], [0], [0], [1], [0, 0, 1, 1], [], []>} : vector<8x32xf32>, vector<32x128xf32>, vector<8x128xf32> -> vector<8x128xf32>
    %147 = arith.addf %145, %146 : vector<8x128xf32>
    %148 = vector.extract_strided_slice %147 {offsets = [0, 0], sizes = [8, 32], strides = [1, 1]} : vector<8x128xf32> to vector<8x32xf32>
    %149 = arith.negf %148 : vector<8x32xf32>
    %150 = math.exp %149 : vector<8x32xf32>
    %cst_41 = arith.constant 1.000000e+00 : f32
    %151 = vector.broadcast %cst_41 : f32 to vector<8x32xf32>
    %152 = arith.addf %151, %150 : vector<8x32xf32>
    %153 = arith.divf %151, %152 : vector<8x32xf32>
    %154 = vector.extract_strided_slice %147 {offsets = [0, 32], sizes = [8, 32], strides = [1, 1]} : vector<8x128xf32> to vector<8x32xf32>
    %155 = arith.negf %154 : vector<8x32xf32>
    %156 = math.exp %155 : vector<8x32xf32>
    %cst_42 = arith.constant 1.000000e+00 : f32
    %157 = vector.broadcast %cst_42 : f32 to vector<8x32xf32>
    %158 = arith.addf %157, %156 : vector<8x32xf32>
    %159 = arith.divf %157, %158 : vector<8x32xf32>
    %160 = vector.extract_strided_slice %147 {offsets = [0, 64], sizes = [8, 32], strides = [1, 1]} : vector<8x128xf32> to vector<8x32xf32>
    %161 = math.tanh %160 : vector<8x32xf32>
    %162 = vector.extract_strided_slice %147 {offsets = [0, 96], sizes = [8, 32], strides = [1, 1]} : vector<8x128xf32> to vector<8x32xf32>
    %163 = arith.negf %162 : vector<8x32xf32>
    %164 = math.exp %163 : vector<8x32xf32>
    %cst_43 = arith.constant 1.000000e+00 : f32
    %165 = vector.broadcast %cst_43 : f32 to vector<8x32xf32>
    %166 = arith.addf %165, %164 : vector<8x32xf32>
    %167 = arith.divf %165, %166 : vector<8x32xf32>
    %168 = arith.mulf %159, %137 : vector<8x32xf32>
    %169 = arith.mulf %153, %161 : vector<8x32xf32>
    %170 = arith.addf %168, %169 : vector<8x32xf32>
    %171 = math.tanh %170 : vector<8x32xf32>
    %172 = arith.mulf %167, %171 : vector<8x32xf32>
    %173 = arith.index_cast %143 : i32 to index
    %c0_44 = arith.constant 0 : index
    %174 = vector.load %arg12[%173, %c0_44] : memref<64x32xf32, #tpu.memory_space<vmem>>, vector<8x32xf32>
    tpu.vector_store %arg12[%173, %c0_44], %172 {strides = array<i32>} : memref<64x32xf32, #tpu.memory_space<vmem>>, vector<8x32xf32>,
    %c5_i32 = arith.constant 5 : i32
    %c8_i32_45 = arith.constant 8 : i32
    %175 = arith.muli %c5_i32, %c8_i32_45 : i32
    %176 = tpu.assume_multiple %175, 8 : i32
    %177 = arith.index_cast %176 : i32 to index
    %c0_46 = arith.constant 0 : index
    %178 = vector.load %arg11[%177, %c0_46] : memref<64x128xf32, #tpu.memory_space<vmem>>, vector<8x128xf32>
    %cst_47 = arith.constant dense<0.000000e+00> : vector<8x128xf32>
    %179 = tpu.matmul %172, %8, %cst_47 {dimension_numbers = #tpu.dot_dimension_numbers<[1], [0], [0], [1], [0, 0, 1, 1], [], []>} : vector<8x32xf32>, vector<32x128xf32>, vector<8x128xf32> -> vector<8x128xf32>
    %180 = arith.addf %178, %179 : vector<8x128xf32>
    %181 = vector.extract_strided_slice %180 {offsets = [0, 0], sizes = [8, 32], strides = [1, 1]} : vector<8x128xf32> to vector<8x32xf32>
    %182 = arith.negf %181 : vector<8x32xf32>
    %183 = math.exp %182 : vector<8x32xf32>
    %cst_48 = arith.constant 1.000000e+00 : f32
    %184 = vector.broadcast %cst_48 : f32 to vector<8x32xf32>
    %185 = arith.addf %184, %183 : vector<8x32xf32>
    %186 = arith.divf %184, %185 : vector<8x32xf32>
    %187 = vector.extract_strided_slice %180 {offsets = [0, 32], sizes = [8, 32], strides = [1, 1]} : vector<8x128xf32> to vector<8x32xf32>
    %188 = arith.negf %187 : vector<8x32xf32>
    %189 = math.exp %188 : vector<8x32xf32>
    %cst_49 = arith.constant 1.000000e+00 : f32
    %190 = vector.broadcast %cst_49 : f32 to vector<8x32xf32>
    %191 = arith.addf %190, %189 : vector<8x32xf32>
    %192 = arith.divf %190, %191 : vector<8x32xf32>
    %193 = vector.extract_strided_slice %180 {offsets = [0, 64], sizes = [8, 32], strides = [1, 1]} : vector<8x128xf32> to vector<8x32xf32>
    %194 = math.tanh %193 : vector<8x32xf32>
    %195 = vector.extract_strided_slice %180 {offsets = [0, 96], sizes = [8, 32], strides = [1, 1]} : vector<8x128xf32> to vector<8x32xf32>
    %196 = arith.negf %195 : vector<8x32xf32>
    %197 = math.exp %196 : vector<8x32xf32>
    %cst_50 = arith.constant 1.000000e+00 : f32
    %198 = vector.broadcast %cst_50 : f32 to vector<8x32xf32>
    %199 = arith.addf %198, %197 : vector<8x32xf32>
    %200 = arith.divf %198, %199 : vector<8x32xf32>
    %201 = arith.mulf %192, %170 : vector<8x32xf32>
    %202 = arith.mulf %186, %194 : vector<8x32xf32>
    %203 = arith.addf %201, %202 : vector<8x32xf32>
    %204 = math.tanh %203 : vector<8x32xf32>
    %205 = arith.mulf %200, %204 : vector<8x32xf32>
    %206 = arith.index_cast %176 : i32 to index
    %c0_51 = arith.constant 0 : index
    %207 = vector.load %arg12[%206, %c0_51] : memref<64x32xf32, #tpu.memory_space<vmem>>, vector<8x32xf32>
    tpu.vector_store %arg12[%206, %c0_51], %205 {strides = array<i32>} : memref<64x32xf32, #tpu.memory_space<vmem>>, vector<8x32xf32>,
    %c6_i32 = arith.constant 6 : i32
    %c8_i32_52 = arith.constant 8 : i32
    %208 = arith.muli %c6_i32, %c8_i32_52 : i32
    %209 = tpu.assume_multiple %208, 8 : i32
    %210 = arith.index_cast %209 : i32 to index
    %c0_53 = arith.constant 0 : index
    %211 = vector.load %arg11[%210, %c0_53] : memref<64x128xf32, #tpu.memory_space<vmem>>, vector<8x128xf32>
    %cst_54 = arith.constant dense<0.000000e+00> : vector<8x128xf32>
    %212 = tpu.matmul %205, %8, %cst_54 {dimension_numbers = #tpu.dot_dimension_numbers<[1], [0], [0], [1], [0, 0, 1, 1], [], []>} : vector<8x32xf32>, vector<32x128xf32>, vector<8x128xf32> -> vector<8x128xf32>
    %213 = arith.addf %211, %212 : vector<8x128xf32>
    %214 = vector.extract_strided_slice %213 {offsets = [0, 0], sizes = [8, 32], strides = [1, 1]} : vector<8x128xf32> to vector<8x32xf32>
    %215 = arith.negf %214 : vector<8x32xf32>
    %216 = math.exp %215 : vector<8x32xf32>
    %cst_55 = arith.constant 1.000000e+00 : f32
    %217 = vector.broadcast %cst_55 : f32 to vector<8x32xf32>
    %218 = arith.addf %217, %216 : vector<8x32xf32>
    %219 = arith.divf %217, %218 : vector<8x32xf32>
    %220 = vector.extract_strided_slice %213 {offsets = [0, 32], sizes = [8, 32], strides = [1, 1]} : vector<8x128xf32> to vector<8x32xf32>
    %221 = arith.negf %220 : vector<8x32xf32>
    %222 = math.exp %221 : vector<8x32xf32>
    %cst_56 = arith.constant 1.000000e+00 : f32
    %223 = vector.broadcast %cst_56 : f32 to vector<8x32xf32>
    %224 = arith.addf %223, %222 : vector<8x32xf32>
    %225 = arith.divf %223, %224 : vector<8x32xf32>
    %226 = vector.extract_strided_slice %213 {offsets = [0, 64], sizes = [8, 32], strides = [1, 1]} : vector<8x128xf32> to vector<8x32xf32>
    %227 = math.tanh %226 : vector<8x32xf32>
    %228 = vector.extract_strided_slice %213 {offsets = [0, 96], sizes = [8, 32], strides = [1, 1]} : vector<8x128xf32> to vector<8x32xf32>
    %229 = arith.negf %228 : vector<8x32xf32>
    %230 = math.exp %229 : vector<8x32xf32>
    %cst_57 = arith.constant 1.000000e+00 : f32
    %231 = vector.broadcast %cst_57 : f32 to vector<8x32xf32>
    %232 = arith.addf %231, %230 : vector<8x32xf32>
    %233 = arith.divf %231, %232 : vector<8x32xf32>
    %234 = arith.mulf %225, %203 : vector<8x32xf32>
    %235 = arith.mulf %219, %227 : vector<8x32xf32>
    %236 = arith.addf %234, %235 : vector<8x32xf32>
    %237 = math.tanh %236 : vector<8x32xf32>
    %238 = arith.mulf %233, %237 : vector<8x32xf32>
    %239 = arith.index_cast %209 : i32 to index
    %c0_58 = arith.constant 0 : index
    %240 = vector.load %arg12[%239, %c0_58] : memref<64x32xf32, #tpu.memory_space<vmem>>, vector<8x32xf32>
    tpu.vector_store %arg12[%239, %c0_58], %238 {strides = array<i32>} : memref<64x32xf32, #tpu.memory_space<vmem>>, vector<8x32xf32>,
    %c7_i32 = arith.constant 7 : i32
    %c8_i32_59 = arith.constant 8 : i32
    %241 = arith.muli %c7_i32, %c8_i32_59 : i32
    %242 = tpu.assume_multiple %241, 8 : i32
    %243 = arith.index_cast %242 : i32 to index
    %c0_60 = arith.constant 0 : index
    %244 = vector.load %arg11[%243, %c0_60] : memref<64x128xf32, #tpu.memory_space<vmem>>, vector<8x128xf32>
    %cst_61 = arith.constant dense<0.000000e+00> : vector<8x128xf32>
    %245 = tpu.matmul %238, %8, %cst_61 {dimension_numbers = #tpu.dot_dimension_numbers<[1], [0], [0], [1], [0, 0, 1, 1], [], []>} : vector<8x32xf32>, vector<32x128xf32>, vector<8x128xf32> -> vector<8x128xf32>
    %246 = arith.addf %244, %245 : vector<8x128xf32>
    %247 = vector.extract_strided_slice %246 {offsets = [0, 0], sizes = [8, 32], strides = [1, 1]} : vector<8x128xf32> to vector<8x32xf32>
    %248 = arith.negf %247 : vector<8x32xf32>
    %249 = math.exp %248 : vector<8x32xf32>
    %cst_62 = arith.constant 1.000000e+00 : f32
    %250 = vector.broadcast %cst_62 : f32 to vector<8x32xf32>
    %251 = arith.addf %250, %249 : vector<8x32xf32>
    %252 = arith.divf %250, %251 : vector<8x32xf32>
    %253 = vector.extract_strided_slice %246 {offsets = [0, 32], sizes = [8, 32], strides = [1, 1]} : vector<8x128xf32> to vector<8x32xf32>
    %254 = arith.negf %253 : vector<8x32xf32>
    %255 = math.exp %254 : vector<8x32xf32>
    %cst_63 = arith.constant 1.000000e+00 : f32
    %256 = vector.broadcast %cst_63 : f32 to vector<8x32xf32>
    %257 = arith.addf %256, %255 : vector<8x32xf32>
    %258 = arith.divf %256, %257 : vector<8x32xf32>
    %259 = vector.extract_strided_slice %246 {offsets = [0, 64], sizes = [8, 32], strides = [1, 1]} : vector<8x128xf32> to vector<8x32xf32>
    %260 = math.tanh %259 : vector<8x32xf32>
    %261 = vector.extract_strided_slice %246 {offsets = [0, 96], sizes = [8, 32], strides = [1, 1]} : vector<8x128xf32> to vector<8x32xf32>
    %262 = arith.negf %261 : vector<8x32xf32>
    %263 = math.exp %262 : vector<8x32xf32>
    %cst_64 = arith.constant 1.000000e+00 : f32
    %264 = vector.broadcast %cst_64 : f32 to vector<8x32xf32>
    %265 = arith.addf %264, %263 : vector<8x32xf32>
    %266 = arith.divf %264, %265 : vector<8x32xf32>
    %267 = arith.mulf %258, %236 : vector<8x32xf32>
    %268 = arith.mulf %252, %260 : vector<8x32xf32>
    %269 = arith.addf %267, %268 : vector<8x32xf32>
    %270 = math.tanh %269 : vector<8x32xf32>
    %271 = arith.mulf %266, %270 : vector<8x32xf32>
    %272 = arith.index_cast %242 : i32 to index
    %c0_65 = arith.constant 0 : index
    %273 = vector.load %arg12[%272, %c0_65] : memref<64x32xf32, #tpu.memory_space<vmem>>, vector<8x32xf32>
    tpu.vector_store %arg12[%272, %c0_65], %271 {strides = array<i32>} : memref<64x32xf32, #tpu.memory_space<vmem>>, vector<8x32xf32>,
    %c8_i32_66 = arith.constant 8 : i32
    %c0_67 = arith.constant 0 : index
    %c0_68 = arith.constant 0 : index
    %274 = vector.load %arg12[%c0_67, %c0_68] : memref<64x32xf32, #tpu.memory_space<vmem>>, vector<64x32xf32>
    %c0_69 = arith.constant 0 : index
    %c0_70 = arith.constant 0 : index
    %275 = vector.load %arg5[%c0_69, %c0_70] : memref<32x128xf32, #tpu.memory_space<vmem>>, vector<32x128xf32>
    %cst_71 = arith.constant dense<0.000000e+00> : vector<64x128xf32>
    %276 = tpu.matmul %274, %275, %cst_71 {dimension_numbers = #tpu.dot_dimension_numbers<[1], [0], [0], [1], [0, 0, 1, 1], [], []>} : vector<64x32xf32>, vector<32x128xf32>, vector<64x128xf32> -> vector<64x128xf32>
    %c0_72 = arith.constant 0 : index
    %c0_73 = arith.constant 0 : index
    %277 = vector.load %arg7[%c0_72, %c0_73] : memref<1x128xf32, #tpu.memory_space<vmem>>, vector<1x128xf32>
    %278 = vector.broadcast %277 : vector<1x128xf32> to vector<64x128xf32>
    %279 = arith.addf %276, %278 : vector<64x128xf32>
    %c0_74 = arith.constant 0 : index
    %c0_75 = arith.constant 0 : index
    %280 = vector.load %arg11[%c0_74, %c0_75] : memref<64x128xf32, #tpu.memory_space<vmem>>, vector<64x128xf32>
    tpu.vector_store %arg11[%c0_74, %c0_75], %279 {strides = array<i32>} : memref<64x128xf32, #tpu.memory_space<vmem>>, vector<64x128xf32>,
    %c0_76 = arith.constant 0 : index
    %c0_77 = arith.constant 0 : index
    %281 = vector.load %arg6[%c0_76, %c0_77] : memref<32x128xf32, #tpu.memory_space<vmem>>, vector<32x128xf32>
    %cst_78 = arith.constant 0.000000e+00 : f32
    %282 = vector.broadcast %cst_78 : f32 to vector<8x32xf32>
    %c0_i32_79 = arith.constant 0 : i32
    %c8_i32_80 = arith.constant 8 : i32
    %283 = arith.muli %c0_i32_79, %c8_i32_80 : i32
    %284 = tpu.assume_multiple %283, 8 : i32
    %285 = arith.index_cast %284 : i32 to index
    %c0_81 = arith.constant 0 : index
    %286 = vector.load %arg11[%285, %c0_81] : memref<64x128xf32, #tpu.memory_space<vmem>>, vector<8x128xf32>
    %cst_82 = arith.constant dense<0.000000e+00> : vector<8x128xf32>
    %287 = tpu.matmul %282, %281, %cst_82 {dimension_numbers = #tpu.dot_dimension_numbers<[1], [0], [0], [1], [0, 0, 1, 1], [], []>} : vector<8x32xf32>, vector<32x128xf32>, vector<8x128xf32> -> vector<8x128xf32>
    %288 = arith.addf %286, %287 : vector<8x128xf32>
    %289 = vector.extract_strided_slice %288 {offsets = [0, 0], sizes = [8, 32], strides = [1, 1]} : vector<8x128xf32> to vector<8x32xf32>
    %290 = arith.negf %289 : vector<8x32xf32>
    %291 = math.exp %290 : vector<8x32xf32>
    %cst_83 = arith.constant 1.000000e+00 : f32
    %292 = vector.broadcast %cst_83 : f32 to vector<8x32xf32>
    %293 = arith.addf %292, %291 : vector<8x32xf32>
    %294 = arith.divf %292, %293 : vector<8x32xf32>
    %295 = vector.extract_strided_slice %288 {offsets = [0, 32], sizes = [8, 32], strides = [1, 1]} : vector<8x128xf32> to vector<8x32xf32>
    %296 = arith.negf %295 : vector<8x32xf32>
    %297 = math.exp %296 : vector<8x32xf32>
    %cst_84 = arith.constant 1.000000e+00 : f32
    %298 = vector.broadcast %cst_84 : f32 to vector<8x32xf32>
    %299 = arith.addf %298, %297 : vector<8x32xf32>
    %300 = arith.divf %298, %299 : vector<8x32xf32>
    %301 = vector.extract_strided_slice %288 {offsets = [0, 64], sizes = [8, 32], strides = [1, 1]} : vector<8x128xf32> to vector<8x32xf32>
    %302 = math.tanh %301 : vector<8x32xf32>
    %303 = vector.extract_strided_slice %288 {offsets = [0, 96], sizes = [8, 32], strides = [1, 1]} : vector<8x128xf32> to vector<8x32xf32>
    %304 = arith.negf %303 : vector<8x32xf32>
    %305 = math.exp %304 : vector<8x32xf32>
    %cst_85 = arith.constant 1.000000e+00 : f32
    %306 = vector.broadcast %cst_85 : f32 to vector<8x32xf32>
    %307 = arith.addf %306, %305 : vector<8x32xf32>
    %308 = arith.divf %306, %307 : vector<8x32xf32>
    %309 = arith.mulf %300, %282 : vector<8x32xf32>
    %310 = arith.mulf %294, %302 : vector<8x32xf32>
    %311 = arith.addf %309, %310 : vector<8x32xf32>
    %312 = math.tanh %311 : vector<8x32xf32>
    %313 = arith.mulf %308, %312 : vector<8x32xf32>
    %c1_i32_86 = arith.constant 1 : i32
    %c8_i32_87 = arith.constant 8 : i32
    %314 = arith.muli %c1_i32_86, %c8_i32_87 : i32
    %315 = tpu.assume_multiple %314, 8 : i32
    %316 = arith.index_cast %315 : i32 to index
    %c0_88 = arith.constant 0 : index
    %317 = vector.load %arg11[%316, %c0_88] : memref<64x128xf32, #tpu.memory_space<vmem>>, vector<8x128xf32>
    %cst_89 = arith.constant dense<0.000000e+00> : vector<8x128xf32>
    %318 = tpu.matmul %313, %281, %cst_89 {dimension_numbers = #tpu.dot_dimension_numbers<[1], [0], [0], [1], [0, 0, 1, 1], [], []>} : vector<8x32xf32>, vector<32x128xf32>, vector<8x128xf32> -> vector<8x128xf32>
    %319 = arith.addf %317, %318 : vector<8x128xf32>
    %320 = vector.extract_strided_slice %319 {offsets = [0, 0], sizes = [8, 32], strides = [1, 1]} : vector<8x128xf32> to vector<8x32xf32>
    %321 = arith.negf %320 : vector<8x32xf32>
    %322 = math.exp %321 : vector<8x32xf32>
    %cst_90 = arith.constant 1.000000e+00 : f32
    %323 = vector.broadcast %cst_90 : f32 to vector<8x32xf32>
    %324 = arith.addf %323, %322 : vector<8x32xf32>
    %325 = arith.divf %323, %324 : vector<8x32xf32>
    %326 = vector.extract_strided_slice %319 {offsets = [0, 32], sizes = [8, 32], strides = [1, 1]} : vector<8x128xf32> to vector<8x32xf32>
    %327 = arith.negf %326 : vector<8x32xf32>
    %328 = math.exp %327 : vector<8x32xf32>
    %cst_91 = arith.constant 1.000000e+00 : f32
    %329 = vector.broadcast %cst_91 : f32 to vector<8x32xf32>
    %330 = arith.addf %329, %328 : vector<8x32xf32>
    %331 = arith.divf %329, %330 : vector<8x32xf32>
    %332 = vector.extract_strided_slice %319 {offsets = [0, 64], sizes = [8, 32], strides = [1, 1]} : vector<8x128xf32> to vector<8x32xf32>
    %333 = math.tanh %332 : vector<8x32xf32>
    %334 = vector.extract_strided_slice %319 {offsets = [0, 96], sizes = [8, 32], strides = [1, 1]} : vector<8x128xf32> to vector<8x32xf32>
    %335 = arith.negf %334 : vector<8x32xf32>
    %336 = math.exp %335 : vector<8x32xf32>
    %cst_92 = arith.constant 1.000000e+00 : f32
    %337 = vector.broadcast %cst_92 : f32 to vector<8x32xf32>
    %338 = arith.addf %337, %336 : vector<8x32xf32>
    %339 = arith.divf %337, %338 : vector<8x32xf32>
    %340 = arith.mulf %331, %311 : vector<8x32xf32>
    %341 = arith.mulf %325, %333 : vector<8x32xf32>
    %342 = arith.addf %340, %341 : vector<8x32xf32>
    %343 = math.tanh %342 : vector<8x32xf32>
    %344 = arith.mulf %339, %343 : vector<8x32xf32>
    %c2_i32_93 = arith.constant 2 : i32
    %c8_i32_94 = arith.constant 8 : i32
    %345 = arith.muli %c2_i32_93, %c8_i32_94 : i32
    %346 = tpu.assume_multiple %345, 8 : i32
    %347 = arith.index_cast %346 : i32 to index
    %c0_95 = arith.constant 0 : index
    %348 = vector.load %arg11[%347, %c0_95] : memref<64x128xf32, #tpu.memory_space<vmem>>, vector<8x128xf32>
    %cst_96 = arith.constant dense<0.000000e+00> : vector<8x128xf32>
    %349 = tpu.matmul %344, %281, %cst_96 {dimension_numbers = #tpu.dot_dimension_numbers<[1], [0], [0], [1], [0, 0, 1, 1], [], []>} : vector<8x32xf32>, vector<32x128xf32>, vector<8x128xf32> -> vector<8x128xf32>
    %350 = arith.addf %348, %349 : vector<8x128xf32>
    %351 = vector.extract_strided_slice %350 {offsets = [0, 0], sizes = [8, 32], strides = [1, 1]} : vector<8x128xf32> to vector<8x32xf32>
    %352 = arith.negf %351 : vector<8x32xf32>
    %353 = math.exp %352 : vector<8x32xf32>
    %cst_97 = arith.constant 1.000000e+00 : f32
    %354 = vector.broadcast %cst_97 : f32 to vector<8x32xf32>
    %355 = arith.addf %354, %353 : vector<8x32xf32>
    %356 = arith.divf %354, %355 : vector<8x32xf32>
    %357 = vector.extract_strided_slice %350 {offsets = [0, 32], sizes = [8, 32], strides = [1, 1]} : vector<8x128xf32> to vector<8x32xf32>
    %358 = arith.negf %357 : vector<8x32xf32>
    %359 = math.exp %358 : vector<8x32xf32>
    %cst_98 = arith.constant 1.000000e+00 : f32
    %360 = vector.broadcast %cst_98 : f32 to vector<8x32xf32>
    %361 = arith.addf %360, %359 : vector<8x32xf32>
    %362 = arith.divf %360, %361 : vector<8x32xf32>
    %363 = vector.extract_strided_slice %350 {offsets = [0, 64], sizes = [8, 32], strides = [1, 1]} : vector<8x128xf32> to vector<8x32xf32>
    %364 = math.tanh %363 : vector<8x32xf32>
    %365 = vector.extract_strided_slice %350 {offsets = [0, 96], sizes = [8, 32], strides = [1, 1]} : vector<8x128xf32> to vector<8x32xf32>
    %366 = arith.negf %365 : vector<8x32xf32>
    %367 = math.exp %366 : vector<8x32xf32>
    %cst_99 = arith.constant 1.000000e+00 : f32
    %368 = vector.broadcast %cst_99 : f32 to vector<8x32xf32>
    %369 = arith.addf %368, %367 : vector<8x32xf32>
    %370 = arith.divf %368, %369 : vector<8x32xf32>
    %371 = arith.mulf %362, %342 : vector<8x32xf32>
    %372 = arith.mulf %356, %364 : vector<8x32xf32>
    %373 = arith.addf %371, %372 : vector<8x32xf32>
    %374 = math.tanh %373 : vector<8x32xf32>
    %375 = arith.mulf %370, %374 : vector<8x32xf32>
    %c3_i32_100 = arith.constant 3 : i32
    %c8_i32_101 = arith.constant 8 : i32
    %376 = arith.muli %c3_i32_100, %c8_i32_101 : i32
    %377 = tpu.assume_multiple %376, 8 : i32
    %378 = arith.index_cast %377 : i32 to index
    %c0_102 = arith.constant 0 : index
    %379 = vector.load %arg11[%378, %c0_102] : memref<64x128xf32, #tpu.memory_space<vmem>>, vector<8x128xf32>
    %cst_103 = arith.constant dense<0.000000e+00> : vector<8x128xf32>
    %380 = tpu.matmul %375, %281, %cst_103 {dimension_numbers = #tpu.dot_dimension_numbers<[1], [0], [0], [1], [0, 0, 1, 1], [], []>} : vector<8x32xf32>, vector<32x128xf32>, vector<8x128xf32> -> vector<8x128xf32>
    %381 = arith.addf %379, %380 : vector<8x128xf32>
    %382 = vector.extract_strided_slice %381 {offsets = [0, 0], sizes = [8, 32], strides = [1, 1]} : vector<8x128xf32> to vector<8x32xf32>
    %383 = arith.negf %382 : vector<8x32xf32>
    %384 = math.exp %383 : vector<8x32xf32>
    %cst_104 = arith.constant 1.000000e+00 : f32
    %385 = vector.broadcast %cst_104 : f32 to vector<8x32xf32>
    %386 = arith.addf %385, %384 : vector<8x32xf32>
    %387 = arith.divf %385, %386 : vector<8x32xf32>
    %388 = vector.extract_strided_slice %381 {offsets = [0, 32], sizes = [8, 32], strides = [1, 1]} : vector<8x128xf32> to vector<8x32xf32>
    %389 = arith.negf %388 : vector<8x32xf32>
    %390 = math.exp %389 : vector<8x32xf32>
    %cst_105 = arith.constant 1.000000e+00 : f32
    %391 = vector.broadcast %cst_105 : f32 to vector<8x32xf32>
    %392 = arith.addf %391, %390 : vector<8x32xf32>
    %393 = arith.divf %391, %392 : vector<8x32xf32>
    %394 = vector.extract_strided_slice %381 {offsets = [0, 64], sizes = [8, 32], strides = [1, 1]} : vector<8x128xf32> to vector<8x32xf32>
    %395 = math.tanh %394 : vector<8x32xf32>
    %396 = vector.extract_strided_slice %381 {offsets = [0, 96], sizes = [8, 32], strides = [1, 1]} : vector<8x128xf32> to vector<8x32xf32>
    %397 = arith.negf %396 : vector<8x32xf32>
    %398 = math.exp %397 : vector<8x32xf32>
    %cst_106 = arith.constant 1.000000e+00 : f32
    %399 = vector.broadcast %cst_106 : f32 to vector<8x32xf32>
    %400 = arith.addf %399, %398 : vector<8x32xf32>
    %401 = arith.divf %399, %400 : vector<8x32xf32>
    %402 = arith.mulf %393, %373 : vector<8x32xf32>
    %403 = arith.mulf %387, %395 : vector<8x32xf32>
    %404 = arith.addf %402, %403 : vector<8x32xf32>
    %405 = math.tanh %404 : vector<8x32xf32>
    %406 = arith.mulf %401, %405 : vector<8x32xf32>
    %c4_i32_107 = arith.constant 4 : i32
    %c8_i32_108 = arith.constant 8 : i32
    %407 = arith.muli %c4_i32_107, %c8_i32_108 : i32
    %408 = tpu.assume_multiple %407, 8 : i32
    %409 = arith.index_cast %408 : i32 to index
    %c0_109 = arith.constant 0 : index
    %410 = vector.load %arg11[%409, %c0_109] : memref<64x128xf32, #tpu.memory_space<vmem>>, vector<8x128xf32>
    %cst_110 = arith.constant dense<0.000000e+00> : vector<8x128xf32>
    %411 = tpu.matmul %406, %281, %cst_110 {dimension_numbers = #tpu.dot_dimension_numbers<[1], [0], [0], [1], [0, 0, 1, 1], [], []>} : vector<8x32xf32>, vector<32x128xf32>, vector<8x128xf32> -> vector<8x128xf32>
    %412 = arith.addf %410, %411 : vector<8x128xf32>
    %413 = vector.extract_strided_slice %412 {offsets = [0, 0], sizes = [8, 32], strides = [1, 1]} : vector<8x128xf32> to vector<8x32xf32>
    %414 = arith.negf %413 : vector<8x32xf32>
    %415 = math.exp %414 : vector<8x32xf32>
    %cst_111 = arith.constant 1.000000e+00 : f32
    %416 = vector.broadcast %cst_111 : f32 to vector<8x32xf32>
    %417 = arith.addf %416, %415 : vector<8x32xf32>
    %418 = arith.divf %416, %417 : vector<8x32xf32>
    %419 = vector.extract_strided_slice %412 {offsets = [0, 32], sizes = [8, 32], strides = [1, 1]} : vector<8x128xf32> to vector<8x32xf32>
    %420 = arith.negf %419 : vector<8x32xf32>
    %421 = math.exp %420 : vector<8x32xf32>
    %cst_112 = arith.constant 1.000000e+00 : f32
    %422 = vector.broadcast %cst_112 : f32 to vector<8x32xf32>
    %423 = arith.addf %422, %421 : vector<8x32xf32>
    %424 = arith.divf %422, %423 : vector<8x32xf32>
    %425 = vector.extract_strided_slice %412 {offsets = [0, 64], sizes = [8, 32], strides = [1, 1]} : vector<8x128xf32> to vector<8x32xf32>
    %426 = math.tanh %425 : vector<8x32xf32>
    %427 = vector.extract_strided_slice %412 {offsets = [0, 96], sizes = [8, 32], strides = [1, 1]} : vector<8x128xf32> to vector<8x32xf32>
    %428 = arith.negf %427 : vector<8x32xf32>
    %429 = math.exp %428 : vector<8x32xf32>
    %cst_113 = arith.constant 1.000000e+00 : f32
    %430 = vector.broadcast %cst_113 : f32 to vector<8x32xf32>
    %431 = arith.addf %430, %429 : vector<8x32xf32>
    %432 = arith.divf %430, %431 : vector<8x32xf32>
    %433 = arith.mulf %424, %404 : vector<8x32xf32>
    %434 = arith.mulf %418, %426 : vector<8x32xf32>
    %435 = arith.addf %433, %434 : vector<8x32xf32>
    %436 = math.tanh %435 : vector<8x32xf32>
    %437 = arith.mulf %432, %436 : vector<8x32xf32>
    %c5_i32_114 = arith.constant 5 : i32
    %c8_i32_115 = arith.constant 8 : i32
    %438 = arith.muli %c5_i32_114, %c8_i32_115 : i32
    %439 = tpu.assume_multiple %438, 8 : i32
    %440 = arith.index_cast %439 : i32 to index
    %c0_116 = arith.constant 0 : index
    %441 = vector.load %arg11[%440, %c0_116] : memref<64x128xf32, #tpu.memory_space<vmem>>, vector<8x128xf32>
    %cst_117 = arith.constant dense<0.000000e+00> : vector<8x128xf32>
    %442 = tpu.matmul %437, %281, %cst_117 {dimension_numbers = #tpu.dot_dimension_numbers<[1], [0], [0], [1], [0, 0, 1, 1], [], []>} : vector<8x32xf32>, vector<32x128xf32>, vector<8x128xf32> -> vector<8x128xf32>
    %443 = arith.addf %441, %442 : vector<8x128xf32>
    %444 = vector.extract_strided_slice %443 {offsets = [0, 0], sizes = [8, 32], strides = [1, 1]} : vector<8x128xf32> to vector<8x32xf32>
    %445 = arith.negf %444 : vector<8x32xf32>
    %446 = math.exp %445 : vector<8x32xf32>
    %cst_118 = arith.constant 1.000000e+00 : f32
    %447 = vector.broadcast %cst_118 : f32 to vector<8x32xf32>
    %448 = arith.addf %447, %446 : vector<8x32xf32>
    %449 = arith.divf %447, %448 : vector<8x32xf32>
    %450 = vector.extract_strided_slice %443 {offsets = [0, 32], sizes = [8, 32], strides = [1, 1]} : vector<8x128xf32> to vector<8x32xf32>
    %451 = arith.negf %450 : vector<8x32xf32>
    %452 = math.exp %451 : vector<8x32xf32>
    %cst_119 = arith.constant 1.000000e+00 : f32
    %453 = vector.broadcast %cst_119 : f32 to vector<8x32xf32>
    %454 = arith.addf %453, %452 : vector<8x32xf32>
    %455 = arith.divf %453, %454 : vector<8x32xf32>
    %456 = vector.extract_strided_slice %443 {offsets = [0, 64], sizes = [8, 32], strides = [1, 1]} : vector<8x128xf32> to vector<8x32xf32>
    %457 = math.tanh %456 : vector<8x32xf32>
    %458 = vector.extract_strided_slice %443 {offsets = [0, 96], sizes = [8, 32], strides = [1, 1]} : vector<8x128xf32> to vector<8x32xf32>
    %459 = arith.negf %458 : vector<8x32xf32>
    %460 = math.exp %459 : vector<8x32xf32>
    %cst_120 = arith.constant 1.000000e+00 : f32
    %461 = vector.broadcast %cst_120 : f32 to vector<8x32xf32>
    %462 = arith.addf %461, %460 : vector<8x32xf32>
    %463 = arith.divf %461, %462 : vector<8x32xf32>
    %464 = arith.mulf %455, %435 : vector<8x32xf32>
    %465 = arith.mulf %449, %457 : vector<8x32xf32>
    %466 = arith.addf %464, %465 : vector<8x32xf32>
    %467 = math.tanh %466 : vector<8x32xf32>
    %468 = arith.mulf %463, %467 : vector<8x32xf32>
    %c6_i32_121 = arith.constant 6 : i32
    %c8_i32_122 = arith.constant 8 : i32
    %469 = arith.muli %c6_i32_121, %c8_i32_122 : i32
    %470 = tpu.assume_multiple %469, 8 : i32
    %471 = arith.index_cast %470 : i32 to index
    %c0_123 = arith.constant 0 : index
    %472 = vector.load %arg11[%471, %c0_123] : memref<64x128xf32, #tpu.memory_space<vmem>>, vector<8x128xf32>
    %cst_124 = arith.constant dense<0.000000e+00> : vector<8x128xf32>
    %473 = tpu.matmul %468, %281, %cst_124 {dimension_numbers = #tpu.dot_dimension_numbers<[1], [0], [0], [1], [0, 0, 1, 1], [], []>} : vector<8x32xf32>, vector<32x128xf32>, vector<8x128xf32> -> vector<8x128xf32>
    %474 = arith.addf %472, %473 : vector<8x128xf32>
    %475 = vector.extract_strided_slice %474 {offsets = [0, 0], sizes = [8, 32], strides = [1, 1]} : vector<8x128xf32> to vector<8x32xf32>
    %476 = arith.negf %475 : vector<8x32xf32>
    %477 = math.exp %476 : vector<8x32xf32>
    %cst_125 = arith.constant 1.000000e+00 : f32
    %478 = vector.broadcast %cst_125 : f32 to vector<8x32xf32>
    %479 = arith.addf %478, %477 : vector<8x32xf32>
    %480 = arith.divf %478, %479 : vector<8x32xf32>
    %481 = vector.extract_strided_slice %474 {offsets = [0, 32], sizes = [8, 32], strides = [1, 1]} : vector<8x128xf32> to vector<8x32xf32>
    %482 = arith.negf %481 : vector<8x32xf32>
    %483 = math.exp %482 : vector<8x32xf32>
    %cst_126 = arith.constant 1.000000e+00 : f32
    %484 = vector.broadcast %cst_126 : f32 to vector<8x32xf32>
    %485 = arith.addf %484, %483 : vector<8x32xf32>
    %486 = arith.divf %484, %485 : vector<8x32xf32>
    %487 = vector.extract_strided_slice %474 {offsets = [0, 64], sizes = [8, 32], strides = [1, 1]} : vector<8x128xf32> to vector<8x32xf32>
    %488 = math.tanh %487 : vector<8x32xf32>
    %489 = vector.extract_strided_slice %474 {offsets = [0, 96], sizes = [8, 32], strides = [1, 1]} : vector<8x128xf32> to vector<8x32xf32>
    %490 = arith.negf %489 : vector<8x32xf32>
    %491 = math.exp %490 : vector<8x32xf32>
    %cst_127 = arith.constant 1.000000e+00 : f32
    %492 = vector.broadcast %cst_127 : f32 to vector<8x32xf32>
    %493 = arith.addf %492, %491 : vector<8x32xf32>
    %494 = arith.divf %492, %493 : vector<8x32xf32>
    %495 = arith.mulf %486, %466 : vector<8x32xf32>
    %496 = arith.mulf %480, %488 : vector<8x32xf32>
    %497 = arith.addf %495, %496 : vector<8x32xf32>
    %498 = math.tanh %497 : vector<8x32xf32>
    %499 = arith.mulf %494, %498 : vector<8x32xf32>
    %c7_i32_128 = arith.constant 7 : i32
    %c8_i32_129 = arith.constant 8 : i32
    %500 = arith.muli %c7_i32_128, %c8_i32_129 : i32
    %501 = tpu.assume_multiple %500, 8 : i32
    %502 = arith.index_cast %501 : i32 to index
    %c0_130 = arith.constant 0 : index
    %503 = vector.load %arg11[%502, %c0_130] : memref<64x128xf32, #tpu.memory_space<vmem>>, vector<8x128xf32>
    %cst_131 = arith.constant dense<0.000000e+00> : vector<8x128xf32>
    %504 = tpu.matmul %499, %281, %cst_131 {dimension_numbers = #tpu.dot_dimension_numbers<[1], [0], [0], [1], [0, 0, 1, 1], [], []>} : vector<8x32xf32>, vector<32x128xf32>, vector<8x128xf32> -> vector<8x128xf32>
    %505 = arith.addf %503, %504 : vector<8x128xf32>
    %506 = vector.extract_strided_slice %505 {offsets = [0, 0], sizes = [8, 32], strides = [1, 1]} : vector<8x128xf32> to vector<8x32xf32>
    %507 = arith.negf %506 : vector<8x32xf32>
    %508 = math.exp %507 : vector<8x32xf32>
    %cst_132 = arith.constant 1.000000e+00 : f32
    %509 = vector.broadcast %cst_132 : f32 to vector<8x32xf32>
    %510 = arith.addf %509, %508 : vector<8x32xf32>
    %511 = arith.divf %509, %510 : vector<8x32xf32>
    %512 = vector.extract_strided_slice %505 {offsets = [0, 32], sizes = [8, 32], strides = [1, 1]} : vector<8x128xf32> to vector<8x32xf32>
    %513 = arith.negf %512 : vector<8x32xf32>
    %514 = math.exp %513 : vector<8x32xf32>
    %cst_133 = arith.constant 1.000000e+00 : f32
    %515 = vector.broadcast %cst_133 : f32 to vector<8x32xf32>
    %516 = arith.addf %515, %514 : vector<8x32xf32>
    %517 = arith.divf %515, %516 : vector<8x32xf32>
    %518 = vector.extract_strided_slice %505 {offsets = [0, 64], sizes = [8, 32], strides = [1, 1]} : vector<8x128xf32> to vector<8x32xf32>
    %519 = math.tanh %518 : vector<8x32xf32>
    %520 = vector.extract_strided_slice %505 {offsets = [0, 96], sizes = [8, 32], strides = [1, 1]} : vector<8x128xf32> to vector<8x32xf32>
    %521 = arith.negf %520 : vector<8x32xf32>
    %522 = math.exp %521 : vector<8x32xf32>
    %cst_134 = arith.constant 1.000000e+00 : f32
    %523 = vector.broadcast %cst_134 : f32 to vector<8x32xf32>
    %524 = arith.addf %523, %522 : vector<8x32xf32>
    %525 = arith.divf %523, %524 : vector<8x32xf32>
    %526 = arith.mulf %517, %497 : vector<8x32xf32>
    %527 = arith.mulf %511, %519 : vector<8x32xf32>
    %528 = arith.addf %526, %527 : vector<8x32xf32>
    %529 = math.tanh %528 : vector<8x32xf32>
    %530 = arith.mulf %525, %529 : vector<8x32xf32>
    %c8_i32_135 = arith.constant 8 : i32
    %c0_136 = arith.constant 0 : index
    %c0_137 = arith.constant 0 : index
    %531 = vector.load %arg8[%c0_136, %c0_137] : memref<32x3xf32, #tpu.memory_space<vmem>>, vector<32x3xf32>
    %cst_138 = arith.constant dense<0.000000e+00> : vector<8x3xf32>
    %532 = tpu.matmul %530, %531, %cst_138 {dimension_numbers = #tpu.dot_dimension_numbers<[1], [0], [0], [1], [0, 0, 1, 1], [], []>} : vector<8x32xf32>, vector<32x3xf32>, vector<8x3xf32> -> vector<8x3xf32>
    %c0_139 = arith.constant 0 : index
    %c0_140 = arith.constant 0 : index
    %533 = vector.load %arg9[%c0_139, %c0_140] : memref<1x3xf32, #tpu.memory_space<vmem>>, vector<1x3xf32>
    %534 = vector.broadcast %533 : vector<1x3xf32> to vector<8x3xf32>
    %535 = arith.addf %532, %534 : vector<8x3xf32>
    %c0_141 = arith.constant 0 : index
    %c0_142 = arith.constant 0 : index
    %536 = vector.load %arg10[%c0_141, %c0_142] : memref<8x3xf32, #tpu.memory_space<vmem>>, vector<8x3xf32>
    tpu.vector_store %arg10[%c0_141, %c0_142], %535 {strides = array<i32>} : memref<8x3xf32, #tpu.memory_space<vmem>>, vector<8x3xf32>,
    return
  }
  func.func @transform_0(%arg0: i32) -> (i32, i32, i32) {
    %c0_i32 = arith.constant 0 : i32
    %c0_i32_0 = arith.constant 0 : i32
    %c0_i32_1 = arith.constant 0 : i32
    return %c0_i32, %arg0, %c0_i32_0 : i32, i32, i32
  }
  func.func @transform_1(%arg0: i32) -> (i32, i32) {
    %c0_i32 = arith.constant 0 : i32
    %c0_i32_0 = arith.constant 0 : i32
    %c0_i32_1 = arith.constant 0 : i32
    return %c0_i32, %c0_i32_0 : i32, i32
  }
  func.func @transform_2(%arg0: i32) -> (i32, i32) {
    %c0_i32 = arith.constant 0 : i32
    %c0_i32_0 = arith.constant 0 : i32
    %c0_i32_1 = arith.constant 0 : i32
    return %c0_i32, %c0_i32_0 : i32, i32
  }
  func.func @transform_3(%arg0: i32) -> (i32, i32) {
    %c0_i32 = arith.constant 0 : i32
    %c0_i32_0 = arith.constant 0 : i32
    %c0_i32_1 = arith.constant 0 : i32
    return %c0_i32, %c0_i32_0 : i32, i32
  }
  func.func @transform_4(%arg0: i32) -> (i32, i32) {
    %c0_i32 = arith.constant 0 : i32
    %c0_i32_0 = arith.constant 0 : i32
    %c0_i32_1 = arith.constant 0 : i32
    return %c0_i32, %c0_i32_0 : i32, i32
  }
  func.func @transform_5(%arg0: i32) -> (i32, i32) {
    %c0_i32 = arith.constant 0 : i32
    %c0_i32_0 = arith.constant 0 : i32
    %c0_i32_1 = arith.constant 0 : i32
    return %c0_i32, %c0_i32_0 : i32, i32
  }
  func.func @transform_6(%arg0: i32) -> (i32, i32) {
    %c0_i32 = arith.constant 0 : i32
    %c0_i32_0 = arith.constant 0 : i32
    %c0_i32_1 = arith.constant 0 : i32
    return %c0_i32, %c0_i32_0 : i32, i32
  }
  func.func @transform_7(%arg0: i32) -> (i32, i32) {
    %c0_i32 = arith.constant 0 : i32
    %c0_i32_0 = arith.constant 0 : i32
    %c0_i32_1 = arith.constant 0 : i32
    return %c0_i32, %c0_i32_0 : i32, i32
  }
  func.func @transform_8(%arg0: i32) -> (i32, i32) {
    %c0_i32 = arith.constant 0 : i32
    %c0_i32_0 = arith.constant 0 : i32
    %c0_i32_1 = arith.constant 0 : i32
    return %c0_i32, %c0_i32_0 : i32, i32
  }
  func.func @transform_9(%arg0: i32) -> (i32, i32) {
    %c0_i32 = arith.constant 0 : i32
    %c0_i32_0 = arith.constant 0 : i32
    return %arg0, %c0_i32 : i32, i32
  }
}

</mosaic_0001>

<llo_original>
// kernel: lstm_classifier_forward.1
$region0: #{lstm_classifier_forward.1}
  #allocation0 [shape = 'u32[]', space=smem, size = 0x4, offset = 0x4, fixed_abs, tag = 'smem constant byte address 0x4 - core index']
  #allocation1 [shape = 'u32[144,128]{1,0:T(1,128)}', space=vmem, size = 0x12000, scoped, tag = 'internal scratch']
  #allocation2 [shape = 'f32[64,128]{1,0:T(8,128)}', space=vmem, size = 0x8000, scoped, tag = 'scratch operand']
  #allocation3 [shape = 'f32[64,32]{1,0:T(8,128)}', space=vmem, size = 0x8000, scoped, tag = 'scratch operand']
  %s0 = inlined_call_operand.vmem [shape: f32[8,8,16], index: 0, kind: input, shape index: {}]
  %s1 = inlined_call_operand.vmem [shape: f32[16,128], index: 1, kind: input, shape index: {}]
  %s2 = inlined_call_operand.vmem [shape: f32[32,128], index: 2, kind: input, shape index: {}]
  %s3 = inlined_call_operand.vmem [shape: f32[1,128], index: 3, kind: input, shape index: {}]
  %s4 = inlined_call_operand.vmem [shape: f32[32,128], index: 4, kind: input, shape index: {}]
  %s5 = inlined_call_operand.vmem [shape: f32[32,128], index: 5, kind: input, shape index: {}]
  %s6 = inlined_call_operand.vmem [shape: f32[1,128], index: 6, kind: input, shape index: {}]
  %s7 = inlined_call_operand.vmem [shape: f32[32,3], index: 7, kind: input, shape index: {}]
  %s8 = inlined_call_operand.vmem [shape: f32[1,3], index: 8, kind: input, shape index: {}]
  %s9 = inlined_call_operand.vmem [shape: f32[8,3], index: 9, kind: output, shape index: {}]
  %s10 = sld [smem:[#allocation0]]
  $region46: #{lstm_classifier_forward.1} parent=0
    _
  %s12 = ssub.s32 1, %s10
  %s13 = scalar_select 0, %s12, %s10
  // Predicated region
  $region2: #{lstm_classifier_forward.1} parent=0 // pred_check
    _
  $region3: #{lstm_classifier_forward.1} parent=0 // pred_check_branch
    %15 = sbr.rel (0) target = $region5
  $region4: #{lstm_classifier_forward.1} parent=0 // pred_region
    _
  $region5: #{lstm_classifier_forward.1} parent=0 // pred_fallthru
    _
  // Predicated region
  $region6: #{lstm_classifier_forward.1} parent=0 // pred_check
    _
  $region7: #{lstm_classifier_forward.1} parent=0 // pred_check_branch
    %17 = sbr.rel (0) target = $region9
  $region8: #{lstm_classifier_forward.1} parent=0 // pred_region
    _
  $region9: #{lstm_classifier_forward.1} parent=0 // pred_fallthru
    _
  // Predicated region
  $region10: #{lstm_classifier_forward.1} parent=0 // pred_check
    _
  $region11: #{lstm_classifier_forward.1} parent=0 // pred_check_branch
    %19 = sbr.rel (0) target = $region13
  $region12: #{lstm_classifier_forward.1} parent=0 // pred_region
    _
  $region13: #{lstm_classifier_forward.1} parent=0 // pred_fallthru
    _
  // Predicated region
  $region14: #{lstm_classifier_forward.1} parent=0 // pred_check
    _
  $region15: #{lstm_classifier_forward.1} parent=0 // pred_check_branch
    %21 = sbr.rel (0) target = $region17
  $region16: #{lstm_classifier_forward.1} parent=0 // pred_region
    _
  $region17: #{lstm_classifier_forward.1} parent=0 // pred_fallthru
    _
  // Predicated region
  $region18: #{lstm_classifier_forward.1} parent=0 // pred_check
    _
  $region19: #{lstm_classifier_forward.1} parent=0 // pred_check_branch
    %23 = sbr.rel (0) target = $region21
  $region20: #{lstm_classifier_forward.1} parent=0 // pred_region
    _
  $region21: #{lstm_classifier_forward.1} parent=0 // pred_fallthru
    _
  // Predicated region
  $region22: #{lstm_classifier_forward.1} parent=0 // pred_check
    _
  $region23: #{lstm_classifier_forward.1} parent=0 // pred_check_branch
    %25 = sbr.rel (0) target = $region25
  $region24: #{lstm_classifier_forward.1} parent=0 // pred_region
    _
  $region25: #{lstm_classifier_forward.1} parent=0 // pred_fallthru
    _
  // Predicated region
  $region26: #{lstm_classifier_forward.1} parent=0 // pred_check
    _
  $region27: #{lstm_classifier_forward.1} parent=0 // pred_check_branch
    %27 = sbr.rel (0) target = $region29
  $region28: #{lstm_classifier_forward.1} parent=0 // pred_region
    _
  $region29: #{lstm_classifier_forward.1} parent=0 // pred_fallthru
    _
  // Predicated region
  $region30: #{lstm_classifier_forward.1} parent=0 // pred_check
    _
  $region31: #{lstm_classifier_forward.1} parent=0 // pred_check_branch
    %29 = sbr.rel (0) target = $region33
  $region32: #{lstm_classifier_forward.1} parent=0 // pred_region
    _
  $region33: #{lstm_classifier_forward.1} parent=0 // pred_fallthru
    _
  // Predicated region
  $region34: #{lstm_classifier_forward.1} parent=0 // pred_check
    _
  $region35: #{lstm_classifier_forward.1} parent=0 // pred_check_branch
    %31 = sbr.rel (0) target = $region37
  $region36: #{lstm_classifier_forward.1} parent=0 // pred_region
    _
  $region37: #{lstm_classifier_forward.1} parent=0 // pred_fallthru
    _
  %v32 = vld [vmem:[%s0] sm:$0xff]
  %v33 = vld [vmem:[%s0 + $0x8] sm:$0xff]
  %v34 = vld [vmem:[%s0 + $0x10] sm:$0xff]
  %v35 = vld [vmem:[%s0 + $0x18] sm:$0xff]
  %v36 = vld [vmem:[%s0 + $0x20] sm:$0xff]
  %v37 = vld [vmem:[%s0 + $0x28] sm:$0xff]
  %v38 = vld [vmem:[%s0 + $0x30] sm:$0xff]
  %v39 = vld [vmem:[%s0 + $0x38] sm:$0xff]
  %v40 = vld [vmem:[%s1] sm:$0xff]
  %v41 = vld [vmem:[%s1 + $0x8] sm:$0xff]
  %v42 = vld [vmem:[%s3] sm:$0x1]
  %v44 = vlaneseq
  %v45 = vshrl.u32 %v44, 7
  %v46 = vsub.s32 0, %v45
  %v47 = vrot.slane %v42, %v46
  %vm49 = vcmask 130048
  %v51 = vsel %vm49, %v32, 0
  %v54 = vsel %vm49, %v33, 0
  %v57 = vsel %vm49, %v34, 0
  %v60 = vsel %vm49, %v35, 0
  %v63 = vsel %vm49, %v36, 0
  %v66 = vsel %vm49, %v37, 0
  %v69 = vsel %vm49, %v38, 0
  %v72 = vsel %vm49, %v39, 0
  %74 = vmatprep.subr.mxu0 0.0
  %75 = vmatpush1.msra.mxu0 %v40
  %76 = vmatprep.subr.mxu0 0.0
  %77 = vmatpush1.msra.mxu0 %v41
  %78 = vmatprep.subr.mxu0 0.0
  %79 = vmatpush1.msra.mxu0 0.0
  %80 = vmatprep.subr.mxu0 0.0
  %81 = vmatpush1.msra.mxu0 0.0
  %82 = vmatprep.subr.mxu0 0.0
  %83 = vmatpush1.msra.mxu0 0.0
  %84 = vmatprep.subr.mxu0 0.0
  %85 = vmatpush1.msra.mxu0 0.0
  %86 = vmatprep.subr.mxu0 0.0
  %87 = vmatpush1.msra.mxu0 0.0
  %88 = vmatprep.subr.mxu0 0.0
  %89 = vmatpush1.msra.mxu0 0.0
  %90 = vmatprep.subr.mxu0 0.0
  %91 = vmatpush1.msra.mxu0 0.0
  %92 = vmatprep.subr.mxu0 0.0
  %93 = vmatpush1.msra.mxu0 0.0
  %94 = vmatprep.subr.mxu0 0.0
  %95 = vmatpush1.msra.mxu0 0.0
  %96 = vmatprep.subr.mxu0 0.0
  %97 = vmatpush1.msra.mxu0 0.0
  %98 = vmatprep.subr.mxu0 0.0
  %99 = vmatpush1.msra.mxu0 0.0
  %100 = vmatprep.subr.mxu0 0.0
  %101 = vmatpush1.msra.mxu0 0.0
  %102 = vmatprep.subr.mxu0 0.0
  %103 = vmatpush1.msra.mxu0 0.0
  %104 = vmatprep.subr.mxu0 0.0
  %105 = vmatpush1.msra.mxu0 0.0
  %106 = vmatprep.subr.mxu0 0.0
  %107 = vmatpush1.msra.mxu0 0.0
  %108 = vmatprep.subr.mxu0 0.0
  %109 = vmatpush1.msra.mxu0 0.0
  %110 = vmatprep.subr.mxu0 0.0
  %111 = vmatpush1.msra.mxu0 0.0
  %112 = vmatprep.subr.mxu0 0.0
  %113 = vmatpush1.msra.mxu0 0.0
  %114 = vmatprep.subr.mxu0 0.0
  %115 = vmatpush1.msra.mxu0 0.0
  %116 = vmatprep.subr.mxu0 0.0
  %117 = vmatpush1.msra.mxu0 0.0
  %118 = vmatprep.subr.mxu0 0.0
  %119 = vmatpush1.msra.mxu0 0.0
  %120 = vmatprep.subr.mxu0 0.0
  %121 = vmatpush1.msra.mxu0 0.0
  %122 = vmatprep.subr.mxu0 0.0
  %123 = vmatpush1.msra.mxu0 0.0
  %124 = vmatprep.subr.mxu0 0.0
  %125 = vmatpush1.msra.mxu0 0.0
  %126 = vmatprep.subr.mxu0 0.0
  %127 = vmatpush1.msra.mxu0 0.0
  %128 = vmatprep.subr.mxu0 0.0
  %129 = vmatpush1.msra.mxu0 0.0
  %130 = vmatprep.subr.mxu0 0.0
  %131 = vmatpush1.msra.mxu0 0.0
  %132 = vmatprep.subr.mxu0 0.0
  %133 = vmatpush1.msra.mxu0 0.0
  %134 = vmatprep.subr.mxu0 0.0
  %135 = vmatpush1.msra.mxu0 0.0
  %136 = vmatprep.subr.mxu0 0.0
  %137 = vmatpush1.msra.mxu0 0.0
  %138 = vmatprep.mubr.f32.mxu0 0.0
  %139 = vmatmul.mubr.f32.gmra.mrb[0].mxu0 %v51
  %v140 = vpop.f32.mrb[0].mxu0
  %v141 = vadd.f32 %v47, %v140
  %v142 = vpop.f32.mrb[0].mxu0
  %143 = vmatprep.mubr.f32.mxu0 0.0
  %144 = vmatmul.mubr.f32.gmra.mrb[0].mxu0 %v54
  %v145 = vpop.f32.mrb[0].mxu0
  %v146 = vadd.f32 %v47, %v145
  %v147 = vpop.f32.mrb[0].mxu0
  %148 = vmatprep.mubr.f32.mxu0 0.0
  %149 = vmatmul.mubr.f32.gmra.mrb[0].mxu0 %v57
  %v150 = vpop.f32.mrb[0].mxu0
  %v151 = vadd.f32 %v47, %v150
  %v152 = vpop.f32.mrb[0].mxu0
  %153 = vmatprep.mubr.f32.mxu0 0.0
  %154 = vmatmul.mubr.f32.gmra.mrb[0].mxu0 %v60
  %v155 = vpop.f32.mrb[0].mxu0
  %v156 = vadd.f32 %v47, %v155
  %v157 = vpop.f32.mrb[0].mxu0
  %158 = vmatprep.mubr.f32.mxu0 0.0
  %159 = vmatmul.mubr.f32.gmra.mrb[0].mxu0 %v63
  %v160 = vpop.f32.mrb[0].mxu0
  %v161 = vadd.f32 %v47, %v160
  %v162 = vpop.f32.mrb[0].mxu0
  %163 = vmatprep.mubr.f32.mxu0 0.0
  %164 = vmatmul.mubr.f32.gmra.mrb[0].mxu0 %v66
  %v165 = vpop.f32.mrb[0].mxu0
  %v166 = vadd.f32 %v47, %v165
  %v167 = vpop.f32.mrb[0].mxu0
  %168 = vmatprep.mubr.f32.mxu0 0.0
  %169 = vmatmul.mubr.f32.gmra.mrb[0].mxu0 %v69
  %v170 = vpop.f32.mrb[0].mxu0
  %v171 = vadd.f32 %v47, %v170
  %v172 = vpop.f32.mrb[0].mxu0
  %173 = vmatprep.mubr.f32.mxu0 0.0
  %174 = vmatmul.mubr.f32.gmra.mrb[0].mxu0 %v72
  %v175 = vpop.f32.mrb[0].mxu0
  %v176 = vadd.f32 %v47, %v175
  %v177 = vpop.f32.mrb[0].mxu0
  %178 = vdwg.mxu0
  %179 = vst [vmem:[#allocation2] sm:$0xff] %v141
  %180 = vst [vmem:[#allocation2 + $0x8] sm:$0xff] %v146
  %181 = vst [vmem:[#allocation2 + $0x10] sm:$0xff] %v151
  %182 = vst [vmem:[#allocation2 + $0x18] sm:$0xff] %v156
  %183 = vst [vmem:[#allocation2 + $0x20] sm:$0xff] %v161
  %184 = vst [vmem:[#allocation2 + $0x28] sm:$0xff] %v166
  %185 = vst [vmem:[#allocation2 + $0x30] sm:$0xff] %v171
  %186 = vst [vmem:[#allocation2 + $0x38] sm:$0xff] %v176
  %v187 = vld [vmem:[%s2] sm:$0xff]
  %v188 = vld [vmem:[%s2 + $0x8] sm:$0xff]
  %v189 = vld [vmem:[%s2 + $0x10] sm:$0xff]
  %v190 = vld [vmem:[%s2 + $0x18] sm:$0xff]
  %v191 = vld [vmem:[#allocation2] sm:$0xff]
  %vm192 = vcmask 261120
  %v194 = vsel %vm192, 0.0, 0
  %196 = vmatprep.subr.mxu0 0.0
  %197 = vmatpush1.msra.mxu0 %v187
  %198 = vmatprep.subr.mxu0 0.0
  %199 = vmatpush1.msra.mxu0 %v188
  %200 = vmatprep.subr.mxu0 0.0
  %201 = vmatpush1.msra.mxu0 %v189
  %202 = vmatprep.subr.mxu0 0.0
  %203 = vmatpush1.msra.mxu0 %v190
  %204 = vmatprep.subr.mxu0 0.0
  %205 = vmatpush1.msra.mxu0 0.0
  %206 = vmatprep.subr.mxu0 0.0
  %207 = vmatpush1.msra.mxu0 0.0
  %208 = vmatprep.subr.mxu0 0.0
  %209 = vmatpush1.msra.mxu0 0.0
  %210 = vmatprep.subr.mxu0 0.0
  %211 = vmatpush1.msra.mxu0 0.0
  %212 = vmatprep.subr.mxu0 0.0
  %213 = vmatpush1.msra.mxu0 0.0
  %214 = vmatprep.subr.mxu0 0.0
  %215 = vmatpush1.msra.mxu0 0.0
  %216 = vmatprep.subr.mxu0 0.0
  %217 = vmatpush1.msra.mxu0 0.0
  %218 = vmatprep.subr.mxu0 0.0
  %219 = vmatpush1.msra.mxu0 0.0
  %220 = vmatprep.subr.mxu0 0.0
  %221 = vmatpush1.msra.mxu0 0.0
  %222 = vmatprep.subr.mxu0 0.0
  %223 = vmatpush1.msra.mxu0 0.0
  %224 = vmatprep.subr.mxu0 0.0
  %225 = vmatpush1.msra.mxu0 0.0
  %226 = vmatprep.subr.mxu0 0.0
  %227 = vmatpush1.msra.mxu0 0.0
  %228 = vmatprep.subr.mxu0 0.0
  %229 = vmatpush1.msra.mxu0 0.0
  %230 = vmatprep.subr.mxu0 0.0
  %231 = vmatpush1.msra.mxu0 0.0
  %232 = vmatprep.subr.mxu0 0.0
  %233 = vmatpush1.msra.mxu0 0.0
  %234 = vmatprep.subr.mxu0 0.0
  %235 = vmatpush1.msra.mxu0 0.0
  %236 = vmatprep.subr.mxu0 0.0
  %237 = vmatpush1.msra.mxu0 0.0
  %238 = vmatprep.subr.mxu0 0.0
  %239 = vmatpush1.msra.mxu0 0.0
  %240 = vmatprep.subr.mxu0 0.0
  %241 = vmatpush1.msra.mxu0 0.0
  %242 = vmatprep.subr.mxu0 0.0
  %243 = vmatpush1.msra.mxu0 0.0
  %244 = vmatprep.subr.mxu0 0.0
  %245 = vmatpush1.msra.mxu0 0.0
  %246 = vmatprep.subr.mxu0 0.0
  %247 = vmatpush1.msra.mxu0 0.0
  %248 = vmatprep.subr.mxu0 0.0
  %249 = vmatpush1.msra.mxu0 0.0
  %250 = vmatprep.subr.mxu0 0.0
  %251 = vmatpush1.msra.mxu0 0.0
  %252 = vmatprep.subr.mxu0 0.0
  %253 = vmatpush1.msra.mxu0 0.0
  %254 = vmatprep.subr.mxu0 0.0
  %255 = vmatpush1.msra.mxu0 0.0
  %256 = vmatprep.subr.mxu0 0.0
  %257 = vmatpush1.msra.mxu0 0.0
  %258 = vmatprep.subr.mxu0 0.0
  %259 = vmatpush1.msra.mxu0 0.0
  %260 = vmatprep.mubr.f32.mxu0 0.0
  %261 = vmatmul.mubr.f32.gmra.mrb[0].mxu0 %v194
  %v262 = vpop.f32.mrb[0].mxu0
  %v263 = vadd.f32 0.0, %v262
  %v264 = vpop.f32.mrb[0].mxu0
  %265 = vdwg.mxu0
  %v266 = vadd.f32 %v191, %v263
  %v267 = vxor.u32 %v266, 2147483648
  %v268 = vmul.f32 %v267, 1.442695
  %v269 = vpow.pop %v268
  %v270 = vadd.f32 %v269, 1.0
  %v271 = vrcp.pop %v270
  %v272 = vmul.f32 1.0, %v271
  %v273 = vtanh.pop %v266
  %v274 = vmul.f32 %v272, 0.0
  %276 = vrot.lane.b32.xlu0 %v273, 64
  %v277 = vpop.permute.xlu0 %276
  %v279 = vmul.f32 %v272, %v277
  %281 = vrot.lane.b32.xlu0 %v279, 32
  %v282 = vpop.permute.xlu0 %281
  %v284 = vadd.f32 %v274, %v282
  %v285 = vtanh.pop %v284
  %287 = vrot.lane.b32.xlu0 %v285, 64
  %v288 = vpop.permute.xlu0 %287
  %v290 = vmul.f32 %v272, %v288
  %292 = vrot.lane.b32.xlu0 %v290, 32
  %v293 = vpop.permute.xlu0 %292
  %295 = vst.msk [vmem:[#allocation3] sm:$0xff] %vm192, %v293
  %s296 = scalar_lea.vmem [#allocation2], 8
  %v297 = vld [vmem:[%s296] sm:$0xff]
  %v298 = vsel %vm192, %v293, 0
  %300 = vmatprep.subr.mxu0 0.0
  %301 = vmatpush1.msra.mxu0 %v187
  %302 = vmatprep.subr.mxu0 0.0
  %303 = vmatpush1.msra.mxu0 %v188
  %304 = vmatprep.subr.mxu0 0.0
  %305 = vmatpush1.msra.mxu0 %v189
  %306 = vmatprep.subr.mxu0 0.0
  %307 = vmatpush1.msra.mxu0 %v190
  %308 = vmatprep.subr.mxu0 0.0
  %309 = vmatpush1.msra.mxu0 0.0
  %310 = vmatprep.subr.mxu0 0.0
  %311 = vmatpush1.msra.mxu0 0.0
  %312 = vmatprep.subr.mxu0 0.0
  %313 = vmatpush1.msra.mxu0 0.0
  %314 = vmatprep.subr.mxu0 0.0
  %315 = vmatpush1.msra.mxu0 0.0
  %316 = vmatprep.subr.mxu0 0.0
  %317 = vmatpush1.msra.mxu0 0.0
  %318 = vmatprep.subr.mxu0 0.0
  %319 = vmatpush1.msra.mxu0 0.0
  %320 = vmatprep.subr.mxu0 0.0
  %321 = vmatpush1.msra.mxu0 0.0
  %322 = vmatprep.subr.mxu0 0.0
  %323 = vmatpush1.msra.mxu0 0.0
  %324 = vmatprep.subr.mxu0 0.0
  %325 = vmatpush1.msra.mxu0 0.0
  %326 = vmatprep.subr.mxu0 0.0
  %327 = vmatpush1.msra.mxu0 0.0
  %328 = vmatprep.subr.mxu0 0.0
  %329 = vmatpush1.msra.mxu0 0.0
  %330 = vmatprep.subr.mxu0 0.0
  %331 = vmatpush1.msra.mxu0 0.0
  %332 = vmatprep.subr.mxu0 0.0
  %333 = vmatpush1.msra.mxu0 0.0
  %334 = vmatprep.subr.mxu0 0.0
  %335 = vmatpush1.msra.mxu0 0.0
  %336 = vmatprep.subr.mxu0 0.0
  %337 = vmatpush1.msra.mxu0 0.0
  %338 = vmatprep.subr.mxu0 0.0
  %339 = vmatpush1.msra.mxu0 0.0
  %340 = vmatprep.subr.mxu0 0.0
  %341 = vmatpush1.msra.mxu0 0.0
  %342 = vmatprep.subr.mxu0 0.0
  %343 = vmatpush1.msra.mxu0 0.0
  %344 = vmatprep.subr.mxu0 0.0
  %345 = vmatpush1.msra.mxu0 0.0
  %346 = vmatprep.subr.mxu0 0.0
  %347 = vmatpush1.msra.mxu0 0.0
  %348 = vmatprep.subr.mxu0 0.0
  %349 = vmatpush1.msra.mxu0 0.0
  %350 = vmatprep.subr.mxu0 0.0
  %351 = vmatpush1.msra.mxu0 0.0
  %352 = vmatprep.subr.mxu0 0.0
  %353 = vmatpush1.msra.mxu0 0.0
  %354 = vmatprep.subr.mxu0 0.0
  %355 = vmatpush1.msra.mxu0 0.0
  %356 = vmatprep.subr.mxu0 0.0
  %357 = vmatpush1.msra.mxu0 0.0
  %358 = vmatprep.subr.mxu0 0.0
  %359 = vmatpush1.msra.mxu0 0.0
  %360 = vmatprep.subr.mxu0 0.0
  %361 = vmatpush1.msra.mxu0 0.0
  %362 = vmatprep.subr.mxu0 0.0
  %363 = vmatpush1.msra.mxu0 0.0
  %364 = vmatprep.mubr.f32.mxu0 0.0
  %365 = vmatmul.mubr.f32.gmra.mrb[0].mxu0 %v298
  %v366 = vpop.f32.mrb[0].mxu0
  %v367 = vadd.f32 0.0, %v366
  %v368 = vpop.f32.mrb[0].mxu0
  %369 = vdwg.mxu0
  %v370 = vadd.f32 %v297, %v367
  %v371 = vxor.u32 %v370, 2147483648
  %v372 = vmul.f32 %v371, 1.442695
  %v373 = vpow.pop %v372
  %v374 = vadd.f32 %v373, 1.0
  %v375 = vrcp.pop %v374
  %v376 = vmul.f32 1.0, %v375
  %v377 = vtanh.pop %v370
  %v378 = vmul.f32 %v376, %v284
  %380 = vrot.lane.b32.xlu0 %v377, 64
  %v381 = vpop.permute.xlu0 %380
  %v383 = vmul.f32 %v376, %v381
  %385 = vrot.lane.b32.xlu0 %v383, 32
  %v386 = vpop.permute.xlu0 %385
  %v388 = vadd.f32 %v378, %v386
  %v389 = vtanh.pop %v388
  %391 = vrot.lane.b32.xlu0 %v389, 64
  %v392 = vpop.permute.xlu0 %391
  %v394 = vmul.f32 %v376, %v392
  %396 = vrot.lane.b32.xlu0 %v394, 32
  %v397 = vpop.permute.xlu0 %396
  %s399 = scalar_lea.vmem [#allocation3], 8
  %400 = vst.msk [vmem:[%s399] sm:$0xff] %vm192, %v397
  %s401 = scalar_lea.vmem [#allocation2], 16
  %v402 = vld [vmem:[%s401] sm:$0xff]
  %v403 = vsel %vm192, %v397, 0
  %405 = vmatprep.subr.mxu0 0.0
  %406 = vmatpush1.msra.mxu0 %v187
  %407 = vmatprep.subr.mxu0 0.0
  %408 = vmatpush1.msra.mxu0 %v188
  %409 = vmatprep.subr.mxu0 0.0
  %410 = vmatpush1.msra.mxu0 %v189
  %411 = vmatprep.subr.mxu0 0.0
  %412 = vmatpush1.msra.mxu0 %v190
  %413 = vmatprep.subr.mxu0 0.0
  %414 = vmatpush1.msra.mxu0 0.0
  %415 = vmatprep.subr.mxu0 0.0
  %416 = vmatpush1.msra.mxu0 0.0
  %417 = vmatprep.subr.mxu0 0.0
  %418 = vmatpush1.msra.mxu0 0.0
  %419 = vmatprep.subr.mxu0 0.0
  %420 = vmatpush1.msra.mxu0 0.0
  %421 = vmatprep.subr.mxu0 0.0
  %422 = vmatpush1.msra.mxu0 0.0
  %423 = vmatprep.subr.mxu0 0.0
  %424 = vmatpush1.msra.mxu0 0.0
  %425 = vmatprep.subr.mxu0 0.0
  %426 = vmatpush1.msra.mxu0 0.0
  %427 = vmatprep.subr.mxu0 0.0
  %428 = vmatpush1.msra.mxu0 0.0
  %429 = vmatprep.subr.mxu0 0.0
  %430 = vmatpush1.msra.mxu0 0.0
  %431 = vmatprep.subr.mxu0 0.0
  %432 = vmatpush1.msra.mxu0 0.0
  %433 = vmatprep.subr.mxu0 0.0
  %434 = vmatpush1.msra.mxu0 0.0
  %435 = vmatprep.subr.mxu0 0.0
  %436 = vmatpush1.msra.mxu0 0.0
  %437 = vmatprep.subr.mxu0 0.0
  %438 = vmatpush1.msra.mxu0 0.0
  %439 = vmatprep.subr.mxu0 0.0
  %440 = vmatpush1.msra.mxu0 0.0
  %441 = vmatprep.subr.mxu0 0.0
  %442 = vmatpush1.msra.mxu0 0.0
  %443 = vmatprep.subr.mxu0 0.0
  %444 = vmatpush1.msra.mxu0 0.0
  %445 = vmatprep.subr.mxu0 0.0
  %446 = vmatpush1.msra.mxu0 0.0
  %447 = vmatprep.subr.mxu0 0.0
  %448 = vmatpush1.msra.mxu0 0.0
  %449 = vmatprep.subr.mxu0 0.0
  %450 = vmatpush1.msra.mxu0 0.0
  %451 = vmatprep.subr.mxu0 0.0
  %452 = vmatpush1.msra.mxu0 0.0
  %453 = vmatprep.subr.mxu0 0.0
  %454 = vmatpush1.msra.mxu0 0.0
  %455 = vmatprep.subr.mxu0 0.0
  %456 = vmatpush1.msra.mxu0 0.0
  %457 = vmatprep.subr.mxu0 0.0
  %458 = vmatpush1.msra.mxu0 0.0
  %459 = vmatprep.subr.mxu0 0.0
  %460 = vmatpush1.msra.mxu0 0.0
  %461 = vmatprep.subr.mxu0 0.0
  %462 = vmatpush1.msra.mxu0 0.0
  %463 = vmatprep.subr.mxu0 0.0
  %464 = vmatpush1.msra.mxu0 0.0
  %465 = vmatprep.subr.mxu0 0.0
  %466 = vmatpush1.msra.mxu0 0.0
  %467 = vmatprep.subr.mxu0 0.0
  %468 = vmatpush1.msra.mxu0 0.0
  %469 = vmatprep.mubr.f32.mxu0 0.0
  %470 = vmatmul.mubr.f32.gmra.mrb[0].mxu0 %v403
  %v471 = vpop.f32.mrb[0].mxu0
  %v472 = vadd.f32 0.0, %v471
  %v473 = vpop.f32.mrb[0].mxu0
  %474 = vdwg.mxu0
  %v475 = vadd.f32 %v402, %v472
  %v476 = vxor.u32 %v475, 2147483648
  %v477 = vmul.f32 %v476, 1.442695
  %v478 = vpow.pop %v477
  %v479 = vadd.f32 %v478, 1.0
  %v480 = vrcp.pop %v479
  %v481 = vmul.f32 1.0, %v480
  %v482 = vtanh.pop %v475
  %v483 = vmul.f32 %v481, %v388
  %485 = vrot.lane.b32.xlu0 %v482, 64
  %v486 = vpop.permute.xlu0 %485
  %v488 = vmul.f32 %v481, %v486
  %490 = vrot.lane.b32.xlu0 %v488, 32
  %v491 = vpop.permute.xlu0 %490
  %v493 = vadd.f32 %v483, %v491
  %v494 = vtanh.pop %v493
  %496 = vrot.lane.b32.xlu0 %v494, 64
  %v497 = vpop.permute.xlu0 %496
  %v499 = vmul.f32 %v481, %v497
  %501 = vrot.lane.b32.xlu0 %v499, 32
  %v502 = vpop.permute.xlu0 %501
  %s504 = scalar_lea.vmem [#allocation3], 16
  %505 = vst.msk [vmem:[%s504] sm:$0xff] %vm192, %v502
  %s506 = scalar_lea.vmem [#allocation2], 24
  %v507 = vld [vmem:[%s506] sm:$0xff]
  %v508 = vsel %vm192, %v502, 0
  %510 = vmatprep.subr.mxu0 0.0
  %511 = vmatpush1.msra.mxu0 %v187
  %512 = vmatprep.subr.mxu0 0.0
  %513 = vmatpush1.msra.mxu0 %v188
  %514 = vmatprep.subr.mxu0 0.0
  %515 = vmatpush1.msra.mxu0 %v189
  %516 = vmatprep.subr.mxu0 0.0
  %517 = vmatpush1.msra.mxu0 %v190
  %518 = vmatprep.subr.mxu0 0.0
  %519 = vmatpush1.msra.mxu0 0.0
  %520 = vmatprep.subr.mxu0 0.0
  %521 = vmatpush1.msra.mxu0 0.0
  %522 = vmatprep.subr.mxu0 0.0
  %523 = vmatpush1.msra.mxu0 0.0
  %524 = vmatprep.subr.mxu0 0.0
  %525 = vmatpush1.msra.mxu0 0.0
  %526 = vmatprep.subr.mxu0 0.0
  %527 = vmatpush1.msra.mxu0 0.0
  %528 = vmatprep.subr.mxu0 0.0
  %529 = vmatpush1.msra.mxu0 0.0
  %530 = vmatprep.subr.mxu0 0.0
  %531 = vmatpush1.msra.mxu0 0.0
  %532 = vmatprep.subr.mxu0 0.0
  %533 = vmatpush1.msra.mxu0 0.0
  %534 = vmatprep.subr.mxu0 0.0
  %535 = vmatpush1.msra.mxu0 0.0
  %536 = vmatprep.subr.mxu0 0.0
  %537 = vmatpush1.msra.mxu0 0.0
  %538 = vmatprep.subr.mxu0 0.0
  %539 = vmatpush1.msra.mxu0 0.0
  %540 = vmatprep.subr.mxu0 0.0
  %541 = vmatpush1.msra.mxu0 0.0
  %542 = vmatprep.subr.mxu0 0.0
  %543 = vmatpush1.msra.mxu0 0.0
  %544 = vmatprep.subr.mxu0 0.0
  %545 = vmatpush1.msra.mxu0 0.0
  %546 = vmatprep.subr.mxu0 0.0
  %547 = vmatpush1.msra.mxu0 0.0
  %548 = vmatprep.subr.mxu0 0.0
  %549 = vmatpush1.msra.mxu0 0.0
  %550 = vmatprep.subr.mxu0 0.0
  %551 = vmatpush1.msra.mxu0 0.0
  %552 = vmatprep.subr.mxu0 0.0
  %553 = vmatpush1.msra.mxu0 0.0
  %554 = vmatprep.subr.mxu0 0.0
  %555 = vmatpush1.msra.mxu0 0.0
  %556 = vmatprep.subr.mxu0 0.0
  %557 = vmatpush1.msra.mxu0 0.0
  %558 = vmatprep.subr.mxu0 0.0
  %559 = vmatpush1.msra.mxu0 0.0
  %560 = vmatprep.subr.mxu0 0.0
  %561 = vmatpush1.msra.mxu0 0.0
  %562 = vmatprep.subr.mxu0 0.0
  %563 = vmatpush1.msra.mxu0 0.0
  %564 = vmatprep.subr.mxu0 0.0
  %565 = vmatpush1.msra.mxu0 0.0
  %566 = vmatprep.subr.mxu0 0.0
  %567 = vmatpush1.msra.mxu0 0.0
  %568 = vmatprep.subr.mxu0 0.0
  %569 = vmatpush1.msra.mxu0 0.0
  %570 = vmatprep.subr.mxu0 0.0
  %571 = vmatpush1.msra.mxu0 0.0
  %572 = vmatprep.subr.mxu0 0.0
  %573 = vmatpush1.msra.mxu0 0.0
  %574 = vmatprep.mubr.f32.mxu0 0.0
  %575 = vmatmul.mubr.f32.gmra.mrb[0].mxu0 %v508
  %v576 = vpop.f32.mrb[0].mxu0
  %v577 = vadd.f32 0.0, %v576
  %v578 = vpop.f32.mrb[0].mxu0
  %579 = vdwg.mxu0
  %v580 = vadd.f32 %v507, %v577
  %v581 = vxor.u32 %v580, 2147483648
  %v582 = vmul.f32 %v581, 1.442695
  %v583 = vpow.pop %v582
  %v584 = vadd.f32 %v583, 1.0
  %v585 = vrcp.pop %v584
  %v586 = vmul.f32 1.0, %v585
  %v587 = vtanh.pop %v580
  %v588 = vmul.f32 %v586, %v493
  %590 = vrot.lane.b32.xlu0 %v587, 64
  %v591 = vpop.permute.xlu0 %590
  %v593 = vmul.f32 %v586, %v591
  %595 = vrot.lane.b32.xlu0 %v593, 32
  %v596 = vpop.permute.xlu0 %595
  %v598 = vadd.f32 %v588, %v596
  %v599 = vtanh.pop %v598
  %601 = vrot.lane.b32.xlu0 %v599, 64
  %v602 = vpop.permute.xlu0 %601
  %v604 = vmul.f32 %v586, %v602
  %606 = vrot.lane.b32.xlu0 %v604, 32
  %v607 = vpop.permute.xlu0 %606
  %s609 = scalar_lea.vmem [#allocation3], 24
  %610 = vst.msk [vmem:[%s609] sm:$0xff] %vm192, %v607
  %s611 = scalar_lea.vmem [#allocation2], 32
  %v612 = vld [vmem:[%s611] sm:$0xff]
  %v613 = vsel %vm192, %v607, 0
  %615 = vmatprep.subr.mxu0 0.0
  %616 = vmatpush1.msra.mxu0 %v187
  %617 = vmatprep.subr.mxu0 0.0
  %618 = vmatpush1.msra.mxu0 %v188
  %619 = vmatprep.subr.mxu0 0.0
  %620 = vmatpush1.msra.mxu0 %v189
  %621 = vmatprep.subr.mxu0 0.0
  %622 = vmatpush1.msra.mxu0 %v190
  %623 = vmatprep.subr.mxu0 0.0
  %624 = vmatpush1.msra.mxu0 0.0
  %625 = vmatprep.subr.mxu0 0.0
  %626 = vmatpush1.msra.mxu0 0.0
  %627 = vmatprep.subr.mxu0 0.0
  %628 = vmatpush1.msra.mxu0 0.0
  %629 = vmatprep.subr.mxu0 0.0
  %630 = vmatpush1.msra.mxu0 0.0
  %631 = vmatprep.subr.mxu0 0.0
  %632 = vmatpush1.msra.mxu0 0.0
  %633 = vmatprep.subr.mxu0 0.0
  %634 = vmatpush1.msra.mxu0 0.0
  %635 = vmatprep.subr.mxu0 0.0
  %636 = vmatpush1.msra.mxu0 0.0
  %637 = vmatprep.subr.mxu0 0.0
  %638 = vmatpush1.msra.mxu0 0.0
  %639 = vmatprep.subr.mxu0 0.0
  %640 = vmatpush1.msra.mxu0 0.0
  %641 = vmatprep.subr.mxu0 0.0
  %642 = vmatpush1.msra.mxu0 0.0
  %643 = vmatprep.subr.mxu0 0.0
  %644 = vmatpush1.msra.mxu0 0.0
  %645 = vmatprep.subr.mxu0 0.0
  %646 = vmatpush1.msra.mxu0 0.0
  %647 = vmatprep.subr.mxu0 0.0
  %648 = vmatpush1.msra.mxu0 0.0
  %649 = vmatprep.subr.mxu0 0.0
  %650 = vmatpush1.msra.mxu0 0.0
  %651 = vmatprep.subr.mxu0 0.0
  %652 = vmatpush1.msra.mxu0 0.0
  %653 = vmatprep.subr.mxu0 0.0
  %654 = vmatpush1.msra.mxu0 0.0
  %655 = vmatprep.subr.mxu0 0.0
  %656 = vmatpush1.msra.mxu0 0.0
  %657 = vmatprep.subr.mxu0 0.0
  %658 = vmatpush1.msra.mxu0 0.0
  %659 = vmatprep.subr.mxu0 0.0
  %660 = vmatpush1.msra.mxu0 0.0
  %661 = vmatprep.subr.mxu0 0.0
  %662 = vmatpush1.msra.mxu0 0.0
  %663 = vmatprep.subr.mxu0 0.0
  %664 = vmatpush1.msra.mxu0 0.0
  %665 = vmatprep.subr.mxu0 0.0
  %666 = vmatpush1.msra.mxu0 0.0
  %667 = vmatprep.subr.mxu0 0.0
  %668 = vmatpush1.msra.mxu0 0.0
  %669 = vmatprep.subr.mxu0 0.0
  %670 = vmatpush1.msra.mxu0 0.0
  %671 = vmatprep.subr.mxu0 0.0
  %672 = vmatpush1.msra.mxu0 0.0
  %673 = vmatprep.subr.mxu0 0.0
  %674 = vmatpush1.msra.mxu0 0.0
  %675 = vmatprep.subr.mxu0 0.0
  %676 = vmatpush1.msra.mxu0 0.0
  %677 = vmatprep.subr.mxu0 0.0
  %678 = vmatpush1.msra.mxu0 0.0
  %679 = vmatprep.mubr.f32.mxu0 0.0
  %680 = vmatmul.mubr.f32.gmra.mrb[0].mxu0 %v613
  %v681 = vpop.f32.mrb[0].mxu0
  %v682 = vadd.f32 0.0, %v681
  %v683 = vpop.f32.mrb[0].mxu0
  %684 = vdwg.mxu0
  %v685 = vadd.f32 %v612, %v682
  %v686 = vxor.u32 %v685, 2147483648
  %v687 = vmul.f32 %v686, 1.442695
  %v688 = vpow.pop %v687
  %v689 = vadd.f32 %v688, 1.0
  %v690 = vrcp.pop %v689
  %v691 = vmul.f32 1.0, %v690
  %v692 = vtanh.pop %v685
  %v693 = vmul.f32 %v691, %v598
  %695 = vrot.lane.b32.xlu0 %v692, 64
  %v696 = vpop.permute.xlu0 %695
  %v698 = vmul.f32 %v691, %v696
  %700 = vrot.lane.b32.xlu0 %v698, 32
  %v701 = vpop.permute.xlu0 %700
  %v703 = vadd.f32 %v693, %v701
  %v704 = vtanh.pop %v703
  %706 = vrot.lane.b32.xlu0 %v704, 64
  %v707 = vpop.permute.xlu0 %706
  %v709 = vmul.f32 %v691, %v707
  %711 = vrot.lane.b32.xlu0 %v709, 32
  %v712 = vpop.permute.xlu0 %711
  %s714 = scalar_lea.vmem [#allocation3], 32
  %715 = vst.msk [vmem:[%s714] sm:$0xff] %vm192, %v712
  %s716 = scalar_lea.vmem [#allocation2], 40
  %v717 = vld [vmem:[%s716] sm:$0xff]
  %v718 = vsel %vm192, %v712, 0
  %720 = vmatprep.subr.mxu0 0.0
  %721 = vmatpush1.msra.mxu0 %v187
  %722 = vmatprep.subr.mxu0 0.0
  %723 = vmatpush1.msra.mxu0 %v188
  %724 = vmatprep.subr.mxu0 0.0
  %725 = vmatpush1.msra.mxu0 %v189
  %726 = vmatprep.subr.mxu0 0.0
  %727 = vmatpush1.msra.mxu0 %v190
  %728 = vmatprep.subr.mxu0 0.0
  %729 = vmatpush1.msra.mxu0 0.0
  %730 = vmatprep.subr.mxu0 0.0
  %731 = vmatpush1.msra.mxu0 0.0
  %732 = vmatprep.subr.mxu0 0.0
  %733 = vmatpush1.msra.mxu0 0.0
  %734 = vmatprep.subr.mxu0 0.0
  %735 = vmatpush1.msra.mxu0 0.0
  %736 = vmatprep.subr.mxu0 0.0
  %737 = vmatpush1.msra.mxu0 0.0
  %738 = vmatprep.subr.mxu0 0.0
  %739 = vmatpush1.msra.mxu0 0.0
  %740 = vmatprep.subr.mxu0 0.0
  %741 = vmatpush1.msra.mxu0 0.0
  %742 = vmatprep.subr.mxu0 0.0
  %743 = vmatpush1.msra.mxu0 0.0
  %744 = vmatprep.subr.mxu0 0.0
  %745 = vmatpush1.msra.mxu0 0.0
  %746 = vmatprep.subr.mxu0 0.0
  %747 = vmatpush1.msra.mxu0 0.0
  %748 = vmatprep.subr.mxu0 0.0
  %749 = vmatpush1.msra.mxu0 0.0
  %750 = vmatprep.subr.mxu0 0.0
  %751 = vmatpush1.msra.mxu0 0.0
  %752 = vmatprep.subr.mxu0 0.0
  %753 = vmatpush1.msra.mxu0 0.0
  %754 = vmatprep.subr.mxu0 0.0
  %755 = vmatpush1.msra.mxu0 0.0
  %756 = vmatprep.subr.mxu0 0.0
  %757 = vmatpush1.msra.mxu0 0.0
  %758 = vmatprep.subr.mxu0 0.0
  %759 = vmatpush1.msra.mxu0 0.0
  %760 = vmatprep.subr.mxu0 0.0
  %761 = vmatpush1.msra.mxu0 0.0
  %762 = vmatprep.subr.mxu0 0.0
  %763 = vmatpush1.msra.mxu0 0.0
  %764 = vmatprep.subr.mxu0 0.0
  %765 = vmatpush1.msra.mxu0 0.0
  %766 = vmatprep.subr.mxu0 0.0
  %767 = vmatpush1.msra.mxu0 0.0
  %768 = vmatprep.subr.mxu0 0.0
  %769 = vmatpush1.msra.mxu0 0.0
  %770 = vmatprep.subr.mxu0 0.0
  %771 = vmatpush1.msra.mxu0 0.0
  %772 = vmatprep.subr.mxu0 0.0
  %773 = vmatpush1.msra.mxu0 0.0
  %774 = vmatprep.subr.mxu0 0.0
  %775 = vmatpush1.msra.mxu0 0.0
  %776 = vmatprep.subr.mxu0 0.0
  %777 = vmatpush1.msra.mxu0 0.0
  %778 = vmatprep.subr.mxu0 0.0
  %779 = vmatpush1.msra.mxu0 0.0
  %780 = vmatprep.subr.mxu0 0.0
  %781 = vmatpush1.msra.mxu0 0.0
  %782 = vmatprep.subr.mxu0 0.0
  %783 = vmatpush1.msra.mxu0 0.0
  %784 = vmatprep.mubr.f32.mxu0 0.0
  %785 = vmatmul.mubr.f32.gmra.mrb[0].mxu0 %v718
  %v786 = vpop.f32.mrb[0].mxu0
  %v787 = vadd.f32 0.0, %v786
  %v788 = vpop.f32.mrb[0].mxu0
  %789 = vdwg.mxu0
  %v790 = vadd.f32 %v717, %v787
  %v791 = vxor.u32 %v790, 2147483648
  %v792 = vmul.f32 %v791, 1.442695
  %v793 = vpow.pop %v792
  %v794 = vadd.f32 %v793, 1.0
  %v795 = vrcp.pop %v794
  %v796 = vmul.f32 1.0, %v795
  %v797 = vtanh.pop %v790
  %v798 = vmul.f32 %v796, %v703
  %800 = vrot.lane.b32.xlu0 %v797, 64
  %v801 = vpop.permute.xlu0 %800
  %v803 = vmul.f32 %v796, %v801
  %805 = vrot.lane.b32.xlu0 %v803, 32
  %v806 = vpop.permute.xlu0 %805
  %v808 = vadd.f32 %v798, %v806
  %v809 = vtanh.pop %v808
  %811 = vrot.lane.b32.xlu0 %v809, 64
  %v812 = vpop.permute.xlu0 %811
  %v814 = vmul.f32 %v796, %v812
  %816 = vrot.lane.b32.xlu0 %v814, 32
  %v817 = vpop.permute.xlu0 %816
  %s819 = scalar_lea.vmem [#allocation3], 40
  %820 = vst.msk [vmem:[%s819] sm:$0xff] %vm192, %v817
  %s821 = scalar_lea.vmem [#allocation2], 48
  %v822 = vld [vmem:[%s821] sm:$0xff]
  %v823 = vsel %vm192, %v817, 0
  %825 = vmatprep.subr.mxu0 0.0
  %826 = vmatpush1.msra.mxu0 %v187
  %827 = vmatprep.subr.mxu0 0.0
  %828 = vmatpush1.msra.mxu0 %v188
  %829 = vmatprep.subr.mxu0 0.0
  %830 = vmatpush1.msra.mxu0 %v189
  %831 = vmatprep.subr.mxu0 0.0
  %832 = vmatpush1.msra.mxu0 %v190
  %833 = vmatprep.subr.mxu0 0.0
  %834 = vmatpush1.msra.mxu0 0.0
  %835 = vmatprep.subr.mxu0 0.0
  %836 = vmatpush1.msra.mxu0 0.0
  %837 = vmatprep.subr.mxu0 0.0
  %838 = vmatpush1.msra.mxu0 0.0
  %839 = vmatprep.subr.mxu0 0.0
  %840 = vmatpush1.msra.mxu0 0.0
  %841 = vmatprep.subr.mxu0 0.0
  %842 = vmatpush1.msra.mxu0 0.0
  %843 = vmatprep.subr.mxu0 0.0
  %844 = vmatpush1.msra.mxu0 0.0
  %845 = vmatprep.subr.mxu0 0.0
  %846 = vmatpush1.msra.mxu0 0.0
  %847 = vmatprep.subr.mxu0 0.0
  %848 = vmatpush1.msra.mxu0 0.0
  %849 = vmatprep.subr.mxu0 0.0
  %850 = vmatpush1.msra.mxu0 0.0
  %851 = vmatprep.subr.mxu0 0.0
  %852 = vmatpush1.msra.mxu0 0.0
  %853 = vmatprep.subr.mxu0 0.0
  %854 = vmatpush1.msra.mxu0 0.0
  %855 = vmatprep.subr.mxu0 0.0
  %856 = vmatpush1.msra.mxu0 0.0
  %857 = vmatprep.subr.mxu0 0.0
  %858 = vmatpush1.msra.mxu0 0.0
  %859 = vmatprep.subr.mxu0 0.0
  %860 = vmatpush1.msra.mxu0 0.0
  %861 = vmatprep.subr.mxu0 0.0
  %862 = vmatpush1.msra.mxu0 0.0
  %863 = vmatprep.subr.mxu0 0.0
  %864 = vmatpush1.msra.mxu0 0.0
  %865 = vmatprep.subr.mxu0 0.0
  %866 = vmatpush1.msra.mxu0 0.0
  %867 = vmatprep.subr.mxu0 0.0
  %868 = vmatpush1.msra.mxu0 0.0
  %869 = vmatprep.subr.mxu0 0.0
  %870 = vmatpush1.msra.mxu0 0.0
  %871 = vmatprep.subr.mxu0 0.0
  %872 = vmatpush1.msra.mxu0 0.0
  %873 = vmatprep.subr.mxu0 0.0
  %874 = vmatpush1.msra.mxu0 0.0
  %875 = vmatprep.subr.mxu0 0.0
  %876 = vmatpush1.msra.mxu0 0.0
  %877 = vmatprep.subr.mxu0 0.0
  %878 = vmatpush1.msra.mxu0 0.0
  %879 = vmatprep.subr.mxu0 0.0
  %880 = vmatpush1.msra.mxu0 0.0
  %881 = vmatprep.subr.mxu0 0.0
  %882 = vmatpush1.msra.mxu0 0.0
  %883 = vmatprep.subr.mxu0 0.0
  %884 = vmatpush1.msra.mxu0 0.0
  %885 = vmatprep.subr.mxu0 0.0
  %886 = vmatpush1.msra.mxu0 0.0
  %887 = vmatprep.subr.mxu0 0.0
  %888 = vmatpush1.msra.mxu0 0.0
  %889 = vmatprep.mubr.f32.mxu0 0.0
  %890 = vmatmul.mubr.f32.gmra.mrb[0].mxu0 %v823
  %v891 = vpop.f32.mrb[0].mxu0
  %v892 = vadd.f32 0.0, %v891
  %v893 = vpop.f32.mrb[0].mxu0
  %894 = vdwg.mxu0
  %v895 = vadd.f32 %v822, %v892
  %v896 = vxor.u32 %v895, 2147483648
  %v897 = vmul.f32 %v896, 1.442695
  %v898 = vpow.pop %v897
  %v899 = vadd.f32 %v898, 1.0
  %v900 = vrcp.pop %v899
  %v901 = vmul.f32 1.0, %v900
  %v902 = vtanh.pop %v895
  %v903 = vmul.f32 %v901, %v808
  %905 = vrot.lane.b32.xlu0 %v902, 64
  %v906 = vpop.permute.xlu0 %905
  %v908 = vmul.f32 %v901, %v906
  %910 = vrot.lane.b32.xlu0 %v908, 32
  %v911 = vpop.permute.xlu0 %910
  %v913 = vadd.f32 %v903, %v911
  %v914 = vtanh.pop %v913
  %916 = vrot.lane.b32.xlu0 %v914, 64
  %v917 = vpop.permute.xlu0 %916
  %v919 = vmul.f32 %v901, %v917
  %921 = vrot.lane.b32.xlu0 %v919, 32
  %v922 = vpop.permute.xlu0 %921
  %s924 = scalar_lea.vmem [#allocation3], 48
  %925 = vst.msk [vmem:[%s924] sm:$0xff] %vm192, %v922
  %s926 = scalar_lea.vmem [#allocation2], 56
  %v927 = vld [vmem:[%s926] sm:$0xff]
  %v928 = vsel %vm192, %v922, 0
  %930 = vmatprep.subr.mxu0 0.0
  %931 = vmatpush1.msra.mxu0 %v187
  %932 = vmatprep.subr.mxu0 0.0
  %933 = vmatpush1.msra.mxu0 %v188
  %934 = vmatprep.subr.mxu0 0.0
  %935 = vmatpush1.msra.mxu0 %v189
  %936 = vmatprep.subr.mxu0 0.0
  %937 = vmatpush1.msra.mxu0 %v190
  %938 = vmatprep.subr.mxu0 0.0
  %939 = vmatpush1.msra.mxu0 0.0
  %940 = vmatprep.subr.mxu0 0.0
  %941 = vmatpush1.msra.mxu0 0.0
  %942 = vmatprep.subr.mxu0 0.0
  %943 = vmatpush1.msra.mxu0 0.0
  %944 = vmatprep.subr.mxu0 0.0
  %945 = vmatpush1.msra.mxu0 0.0
  %946 = vmatprep.subr.mxu0 0.0
  %947 = vmatpush1.msra.mxu0 0.0
  %948 = vmatprep.subr.mxu0 0.0
  %949 = vmatpush1.msra.mxu0 0.0
  %950 = vmatprep.subr.mxu0 0.0
  %951 = vmatpush1.msra.mxu0 0.0
  %952 = vmatprep.subr.mxu0 0.0
  %953 = vmatpush1.msra.mxu0 0.0
  %954 = vmatprep.subr.mxu0 0.0
  %955 = vmatpush1.msra.mxu0 0.0
  %956 = vmatprep.subr.mxu0 0.0
  %957 = vmatpush1.msra.mxu0 0.0
  %958 = vmatprep.subr.mxu0 0.0
  %959 = vmatpush1.msra.mxu0 0.0
  %960 = vmatprep.subr.mxu0 0.0
  %961 = vmatpush1.msra.mxu0 0.0
  %962 = vmatprep.subr.mxu0 0.0
  %963 = vmatpush1.msra.mxu0 0.0
  %964 = vmatprep.subr.mxu0 0.0
  %965 = vmatpush1.msra.mxu0 0.0
  %966 = vmatprep.subr.mxu0 0.0
  %967 = vmatpush1.msra.mxu0 0.0
  %968 = vmatprep.subr.mxu0 0.0
  %969 = vmatpush1.msra.mxu0 0.0
  %970 = vmatprep.subr.mxu0 0.0
  %971 = vmatpush1.msra.mxu0 0.0
  %972 = vmatprep.subr.mxu0 0.0
  %973 = vmatpush1.msra.mxu0 0.0
  %974 = vmatprep.subr.mxu0 0.0
  %975 = vmatpush1.msra.mxu0 0.0
  %976 = vmatprep.subr.mxu0 0.0
  %977 = vmatpush1.msra.mxu0 0.0
  %978 = vmatprep.subr.mxu0 0.0
  %979 = vmatpush1.msra.mxu0 0.0
  %980 = vmatprep.subr.mxu0 0.0
  %981 = vmatpush1.msra.mxu0 0.0
  %982 = vmatprep.subr.mxu0 0.0
  %983 = vmatpush1.msra.mxu0 0.0
  %984 = vmatprep.subr.mxu0 0.0
  %985 = vmatpush1.msra.mxu0 0.0
  %986 = vmatprep.subr.mxu0 0.0
  %987 = vmatpush1.msra.mxu0 0.0
  %988 = vmatprep.subr.mxu0 0.0
  %989 = vmatpush1.msra.mxu0 0.0
  %990 = vmatprep.subr.mxu0 0.0
  %991 = vmatpush1.msra.mxu0 0.0
  %992 = vmatprep.subr.mxu0 0.0
  %993 = vmatpush1.msra.mxu0 0.0
  %994 = vmatprep.mubr.f32.mxu0 0.0
  %995 = vmatmul.mubr.f32.gmra.mrb[0].mxu0 %v928
  %v996 = vpop.f32.mrb[0].mxu0
  %v997 = vadd.f32 0.0, %v996
  %v998 = vpop.f32.mrb[0].mxu0
  %999 = vdwg.mxu0
  %v1000 = vadd.f32 %v927, %v997
  %v1001 = vxor.u32 %v1000, 2147483648
  %v1002 = vmul.f32 %v1001, 1.442695
  %v1003 = vpow.pop %v1002
  %v1004 = vadd.f32 %v1003, 1.0
  %v1005 = vrcp.pop %v1004
  %v1006 = vmul.f32 1.0, %v1005
  %v1007 = vtanh.pop %v1000
  %v1008 = vmul.f32 %v1006, %v913
  %1010 = vrot.lane.b32.xlu0 %v1007, 64
  %v1011 = vpop.permute.xlu0 %1010
  %v1013 = vmul.f32 %v1006, %v1011
  %1015 = vrot.lane.b32.xlu0 %v1013, 32
  %v1016 = vpop.permute.xlu0 %1015
  %v1018 = vadd.f32 %v1008, %v1016
  %v1019 = vtanh.pop %v1018
  %1021 = vrot.lane.b32.xlu0 %v1019, 64
  %v1022 = vpop.permute.xlu0 %1021
  %v1024 = vmul.f32 %v1006, %v1022
  %1026 = vrot.lane.b32.xlu0 %v1024, 32
  %v1027 = vpop.permute.xlu0 %1026
  %s1029 = scalar_lea.vmem [#allocation3], 56
  %1030 = vst.msk [vmem:[%s1029] sm:$0xff] %vm192, %v1027
  %v1031 = vld [vmem:[#allocation3] sm:$0xff]
  %v1032 = vld [vmem:[#allocation3 + $0x8] sm:$0xff]
  %v1033 = vld [vmem:[#allocation3 + $0x10] sm:$0xff]
  %v1034 = vld [vmem:[#allocation3 + $0x18] sm:$0xff]
  %v1035 = vld [vmem:[#allocation3 + $0x20] sm:$0xff]
  %v1036 = vld [vmem:[#allocation3 + $0x28] sm:$0xff]
  %v1037 = vld [vmem:[#allocation3 + $0x30] sm:$0xff]
  %v1038 = vld [vmem:[#allocation3 + $0x38] sm:$0xff]
  %v1039 = vld [vmem:[%s4] sm:$0xff]
  %v1040 = vld [vmem:[%s4 + $0x8] sm:$0xff]
  %v1041 = vld [vmem:[%s4 + $0x10] sm:$0xff]
  %v1042 = vld [vmem:[%s4 + $0x18] sm:$0xff]
  %v1043 = vld [vmem:[%s6] sm:$0x1]
  %v1045 = vlaneseq
  %v1046 = vshrl.u32 %v1045, 7
  %v1047 = vsub.s32 0, %v1046
  %v1048 = vrot.slane %v1043, %v1047
  %v1051 = vsel %vm192, %v1031, 0
  %v1054 = vsel %vm192, %v1032, 0
  %v1057 = vsel %vm192, %v1033, 0
  %v1060 = vsel %vm192, %v1034, 0
  %v1063 = vsel %vm192, %v1035, 0
  %v1066 = vsel %vm192, %v1036, 0
  %v1069 = vsel %vm192, %v1037, 0
  %v1072 = vsel %vm192, %v1038, 0
  %1074 = vmatprep.subr.mxu0 0.0
  %1075 = vmatpush1.msra.mxu0 %v1039
  %1076 = vmatprep.subr.mxu0 0.0
  %1077 = vmatpush1.msra.mxu0 %v1040
  %1078 = vmatprep.subr.mxu0 0.0
  %1079 = vmatpush1.msra.mxu0 %v1041
  %1080 = vmatprep.subr.mxu0 0.0
  %1081 = vmatpush1.msra.mxu0 %v1042
  %1082 = vmatprep.subr.mxu0 0.0
  %1083 = vmatpush1.msra.mxu0 0.0
  %1084 = vmatprep.subr.mxu0 0.0
  %1085 = vmatpush1.msra.mxu0 0.0
  %1086 = vmatprep.subr.mxu0 0.0
  %1087 = vmatpush1.msra.mxu0 0.0
  %1088 = vmatprep.subr.mxu0 0.0
  %1089 = vmatpush1.msra.mxu0 0.0
  %1090 = vmatprep.subr.mxu0 0.0
  %1091 = vmatpush1.msra.mxu0 0.0
  %1092 = vmatprep.subr.mxu0 0.0
  %1093 = vmatpush1.msra.mxu0 0.0
  %1094 = vmatprep.subr.mxu0 0.0
  %1095 = vmatpush1.msra.mxu0 0.0
  %1096 = vmatprep.subr.mxu0 0.0
  %1097 = vmatpush1.msra.mxu0 0.0
  %1098 = vmatprep.subr.mxu0 0.0
  %1099 = vmatpush1.msra.mxu0 0.0
  %1100 = vmatprep.subr.mxu0 0.0
  %1101 = vmatpush1.msra.mxu0 0.0
  %1102 = vmatprep.subr.mxu0 0.0
  %1103 = vmatpush1.msra.mxu0 0.0
  %1104 = vmatprep.subr.mxu0 0.0
  %1105 = vmatpush1.msra.mxu0 0.0
  %1106 = vmatprep.subr.mxu0 0.0
  %1107 = vmatpush1.msra.mxu0 0.0
  %1108 = vmatprep.subr.mxu0 0.0
  %1109 = vmatpush1.msra.mxu0 0.0
  %1110 = vmatprep.subr.mxu0 0.0
  %1111 = vmatpush1.msra.mxu0 0.0
  %1112 = vmatprep.subr.mxu0 0.0
  %1113 = vmatpush1.msra.mxu0 0.0
  %1114 = vmatprep.subr.mxu0 0.0
  %1115 = vmatpush1.msra.mxu0 0.0
  %1116 = vmatprep.subr.mxu0 0.0
  %1117 = vmatpush1.msra.mxu0 0.0
  %1118 = vmatprep.subr.mxu0 0.0
  %1119 = vmatpush1.msra.mxu0 0.0
  %1120 = vmatprep.subr.mxu0 0.0
  %1121 = vmatpush1.msra.mxu0 0.0
  %1122 = vmatprep.subr.mxu0 0.0
  %1123 = vmatpush1.msra.mxu0 0.0
  %1124 = vmatprep.subr.mxu0 0.0
  %1125 = vmatpush1.msra.mxu0 0.0
  %1126 = vmatprep.subr.mxu0 0.0
  %1127 = vmatpush1.msra.mxu0 0.0
  %1128 = vmatprep.subr.mxu0 0.0
  %1129 = vmatpush1.msra.mxu0 0.0
  %1130 = vmatprep.subr.mxu0 0.0
  %1131 = vmatpush1.msra.mxu0 0.0
  %1132 = vmatprep.subr.mxu0 0.0
  %1133 = vmatpush1.msra.mxu0 0.0
  %1134 = vmatprep.subr.mxu0 0.0
  %1135 = vmatpush1.msra.mxu0 0.0
  %1136 = vmatprep.subr.mxu0 0.0
  %1137 = vmatpush1.msra.mxu0 0.0
  %1138 = vmatprep.mubr.f32.mxu0 0.0
  %1139 = vmatmul.mubr.f32.gmra.mrb[0].mxu0 %v1051
  %v1140 = vpop.f32.mrb[0].mxu0
  %v1141 = vadd.f32 %v1048, %v1140
  %v1142 = vpop.f32.mrb[0].mxu0
  %1143 = vmatprep.mubr.f32.mxu0 0.0
  %1144 = vmatmul.mubr.f32.gmra.mrb[0].mxu0 %v1054
  %v1145 = vpop.f32.mrb[0].mxu0
  %v1146 = vadd.f32 %v1048, %v1145
  %v1147 = vpop.f32.mrb[0].mxu0
  %1148 = vmatprep.mubr.f32.mxu0 0.0
  %1149 = vmatmul.mubr.f32.gmra.mrb[0].mxu0 %v1057
  %v1150 = vpop.f32.mrb[0].mxu0
  %v1151 = vadd.f32 %v1048, %v1150
  %v1152 = vpop.f32.mrb[0].mxu0
  %1153 = vmatprep.mubr.f32.mxu0 0.0
  %1154 = vmatmul.mubr.f32.gmra.mrb[0].mxu0 %v1060
  %v1155 = vpop.f32.mrb[0].mxu0
  %v1156 = vadd.f32 %v1048, %v1155
  %v1157 = vpop.f32.mrb[0].mxu0
  %1158 = vmatprep.mubr.f32.mxu0 0.0
  %1159 = vmatmul.mubr.f32.gmra.mrb[0].mxu0 %v1063
  %v1160 = vpop.f32.mrb[0].mxu0
  %v1161 = vadd.f32 %v1048, %v1160
  %v1162 = vpop.f32.mrb[0].mxu0
  %1163 = vmatprep.mubr.f32.mxu0 0.0
  %1164 = vmatmul.mubr.f32.gmra.mrb[0].mxu0 %v1066
  %v1165 = vpop.f32.mrb[0].mxu0
  %v1166 = vadd.f32 %v1048, %v1165
  %v1167 = vpop.f32.mrb[0].mxu0
  %1168 = vmatprep.mubr.f32.mxu0 0.0
  %1169 = vmatmul.mubr.f32.gmra.mrb[0].mxu0 %v1069
  %v1170 = vpop.f32.mrb[0].mxu0
  %v1171 = vadd.f32 %v1048, %v1170
  %v1172 = vpop.f32.mrb[0].mxu0
  %1173 = vmatprep.mubr.f32.mxu0 0.0
  %1174 = vmatmul.mubr.f32.gmra.mrb[0].mxu0 %v1072
  %v1175 = vpop.f32.mrb[0].mxu0
  %v1176 = vadd.f32 %v1048, %v1175
  %v1177 = vpop.f32.mrb[0].mxu0
  %1178 = vdwg.mxu0
  %1179 = vst [vmem:[#allocation2] sm:$0xff] %v1141
  %1180 = vst [vmem:[#allocation2 + $0x8] sm:$0xff] %v1146
  %1181 = vst [vmem:[#allocation2 + $0x10] sm:$0xff] %v1151
  %1182 = vst [vmem:[#allocation2 + $0x18] sm:$0xff] %v1156
  %1183 = vst [vmem:[#allocation2 + $0x20] sm:$0xff] %v1161
  %1184 = vst [vmem:[#allocation2 + $0x28] sm:$0xff] %v1166
  %1185 = vst [vmem:[#allocation2 + $0x30] sm:$0xff] %v1171
  %1186 = vst [vmem:[#allocation2 + $0x38] sm:$0xff] %v1176
  %v1187 = vld [vmem:[%s5] sm:$0xff]
  %v1188 = vld [vmem:[%s5 + $0x8] sm:$0xff]
  %v1189 = vld [vmem:[%s5 + $0x10] sm:$0xff]
  %v1190 = vld [vmem:[%s5 + $0x18] sm:$0xff]
  %v1191 = vld [vmem:[#allocation2] sm:$0xff]
  %1192 = vmatprep.subr.mxu0 0.0
  %1193 = vmatpush1.msra.mxu0 %v1187
  %1194 = vmatprep.subr.mxu0 0.0
  %1195 = vmatpush1.msra.mxu0 %v1188
  %1196 = vmatprep.subr.mxu0 0.0
  %1197 = vmatpush1.msra.mxu0 %v1189
  %1198 = vmatprep.subr.mxu0 0.0
  %1199 = vmatpush1.msra.mxu0 %v1190
  %1200 = vmatprep.subr.mxu0 0.0
  %1201 = vmatpush1.msra.mxu0 0.0
  %1202 = vmatprep.subr.mxu0 0.0
  %1203 = vmatpush1.msra.mxu0 0.0
  %1204 = vmatprep.subr.mxu0 0.0
  %1205 = vmatpush1.msra.mxu0 0.0
  %1206 = vmatprep.subr.mxu0 0.0
  %1207 = vmatpush1.msra.mxu0 0.0
  %1208 = vmatprep.subr.mxu0 0.0
  %1209 = vmatpush1.msra.mxu0 0.0
  %1210 = vmatprep.subr.mxu0 0.0
  %1211 = vmatpush1.msra.mxu0 0.0
  %1212 = vmatprep.subr.mxu0 0.0
  %1213 = vmatpush1.msra.mxu0 0.0
  %1214 = vmatprep.subr.mxu0 0.0
  %1215 = vmatpush1.msra.mxu0 0.0
  %1216 = vmatprep.subr.mxu0 0.0
  %1217 = vmatpush1.msra.mxu0 0.0
  %1218 = vmatprep.subr.mxu0 0.0
  %1219 = vmatpush1.msra.mxu0 0.0
  %1220 = vmatprep.subr.mxu0 0.0
  %1221 = vmatpush1.msra.mxu0 0.0
  %1222 = vmatprep.subr.mxu0 0.0
  %1223 = vmatpush1.msra.mxu0 0.0
  %1224 = vmatprep.subr.mxu0 0.0
  %1225 = vmatpush1.msra.mxu0 0.0
  %1226 = vmatprep.subr.mxu0 0.0
  %1227 = vmatpush1.msra.mxu0 0.0
  %1228 = vmatprep.subr.mxu0 0.0
  %1229 = vmatpush1.msra.mxu0 0.0
  %1230 = vmatprep.subr.mxu0 0.0
  %1231 = vmatpush1.msra.mxu0 0.0
  %1232 = vmatprep.subr.mxu0 0.0
  %1233 = vmatpush1.msra.mxu0 0.0
  %1234 = vmatprep.subr.mxu0 0.0
  %1235 = vmatpush1.msra.mxu0 0.0
  %1236 = vmatprep.subr.mxu0 0.0
  %1237 = vmatpush1.msra.mxu0 0.0
  %1238 = vmatprep.subr.mxu0 0.0
  %1239 = vmatpush1.msra.mxu0 0.0
  %1240 = vmatprep.subr.mxu0 0.0
  %1241 = vmatpush1.msra.mxu0 0.0
  %1242 = vmatprep.subr.mxu0 0.0
  %1243 = vmatpush1.msra.mxu0 0.0
  %1244 = vmatprep.subr.mxu0 0.0
  %1245 = vmatpush1.msra.mxu0 0.0
  %1246 = vmatprep.subr.mxu0 0.0
  %1247 = vmatpush1.msra.mxu0 0.0
  %1248 = vmatprep.subr.mxu0 0.0
  %1249 = vmatpush1.msra.mxu0 0.0
  %1250 = vmatprep.subr.mxu0 0.0
  %1251 = vmatpush1.msra.mxu0 0.0
  %1252 = vmatprep.subr.mxu0 0.0
  %1253 = vmatpush1.msra.mxu0 0.0
  %1254 = vmatprep.subr.mxu0 0.0
  %1255 = vmatpush1.msra.mxu0 0.0
  %1256 = vmatprep.mubr.f32.mxu0 0.0
  %1257 = vmatmul.mubr.f32.gmra.mrb[0].mxu0 %v194
  %v1258 = vpop.f32.mrb[0].mxu0
  %v1259 = vadd.f32 0.0, %v1258
  %v1260 = vpop.f32.mrb[0].mxu0
  %1261 = vdwg.mxu0
  %v1262 = vadd.f32 %v1191, %v1259
  %v1263 = vxor.u32 %v1262, 2147483648
  %v1264 = vmul.f32 %v1263, 1.442695
  %v1265 = vpow.pop %v1264
  %v1266 = vadd.f32 %v1265, 1.0
  %v1267 = vrcp.pop %v1266
  %v1268 = vmul.f32 1.0, %v1267
  %v1269 = vtanh.pop %v1262
  %v1270 = vmul.f32 %v1268, 0.0
  %1272 = vrot.lane.b32.xlu0 %v1269, 64
  %v1273 = vpop.permute.xlu0 %1272
  %v1275 = vmul.f32 %v1268, %v1273
  %1277 = vrot.lane.b32.xlu0 %v1275, 32
  %v1278 = vpop.permute.xlu0 %1277
  %v1280 = vadd.f32 %v1270, %v1278
  %v1281 = vtanh.pop %v1280
  %1283 = vrot.lane.b32.xlu0 %v1281, 64
  %v1284 = vpop.permute.xlu0 %1283
  %v1286 = vmul.f32 %v1268, %v1284
  %v1287 = vld [vmem:[%s296] sm:$0xff]
  %1289 = vrot.lane.b32.xlu0 %v1286, 32
  %v1290 = vpop.permute.xlu0 %1289
  %v1291 = vsel %vm192, %v1290, 0
  %1293 = vmatprep.subr.mxu0 0.0
  %1294 = vmatpush1.msra.mxu0 %v1187
  %1295 = vmatprep.subr.mxu0 0.0
  %1296 = vmatpush1.msra.mxu0 %v1188
  %1297 = vmatprep.subr.mxu0 0.0
  %1298 = vmatpush1.msra.mxu0 %v1189
  %1299 = vmatprep.subr.mxu0 0.0
  %1300 = vmatpush1.msra.mxu0 %v1190
  %1301 = vmatprep.subr.mxu0 0.0
  %1302 = vmatpush1.msra.mxu0 0.0
  %1303 = vmatprep.subr.mxu0 0.0
  %1304 = vmatpush1.msra.mxu0 0.0
  %1305 = vmatprep.subr.mxu0 0.0
  %1306 = vmatpush1.msra.mxu0 0.0
  %1307 = vmatprep.subr.mxu0 0.0
  %1308 = vmatpush1.msra.mxu0 0.0
  %1309 = vmatprep.subr.mxu0 0.0
  %1310 = vmatpush1.msra.mxu0 0.0
  %1311 = vmatprep.subr.mxu0 0.0
  %1312 = vmatpush1.msra.mxu0 0.0
  %1313 = vmatprep.subr.mxu0 0.0
  %1314 = vmatpush1.msra.mxu0 0.0
  %1315 = vmatprep.subr.mxu0 0.0
  %1316 = vmatpush1.msra.mxu0 0.0
  %1317 = vmatprep.subr.mxu0 0.0
  %1318 = vmatpush1.msra.mxu0 0.0
  %1319 = vmatprep.subr.mxu0 0.0
  %1320 = vmatpush1.msra.mxu0 0.0
  %1321 = vmatprep.subr.mxu0 0.0
  %1322 = vmatpush1.msra.mxu0 0.0
  %1323 = vmatprep.subr.mxu0 0.0
  %1324 = vmatpush1.msra.mxu0 0.0
  %1325 = vmatprep.subr.mxu0 0.0
  %1326 = vmatpush1.msra.mxu0 0.0
  %1327 = vmatprep.subr.mxu0 0.0
  %1328 = vmatpush1.msra.mxu0 0.0
  %1329 = vmatprep.subr.mxu0 0.0
  %1330 = vmatpush1.msra.mxu0 0.0
  %1331 = vmatprep.subr.mxu0 0.0
  %1332 = vmatpush1.msra.mxu0 0.0
  %1333 = vmatprep.subr.mxu0 0.0
  %1334 = vmatpush1.msra.mxu0 0.0
  %1335 = vmatprep.subr.mxu0 0.0
  %1336 = vmatpush1.msra.mxu0 0.0
  %1337 = vmatprep.subr.mxu0 0.0
  %1338 = vmatpush1.msra.mxu0 0.0
  %1339 = vmatprep.subr.mxu0 0.0
  %1340 = vmatpush1.msra.mxu0 0.0
  %1341 = vmatprep.subr.mxu0 0.0
  %1342 = vmatpush1.msra.mxu0 0.0
  %1343 = vmatprep.subr.mxu0 0.0
  %1344 = vmatpush1.msra.mxu0 0.0
  %1345 = vmatprep.subr.mxu0 0.0
  %1346 = vmatpush1.msra.mxu0 0.0
  %1347 = vmatprep.subr.mxu0 0.0
  %1348 = vmatpush1.msra.mxu0 0.0
  %1349 = vmatprep.subr.mxu0 0.0
  %1350 = vmatpush1.msra.mxu0 0.0
  %1351 = vmatprep.subr.mxu0 0.0
  %1352 = vmatpush1.msra.mxu0 0.0
  %1353 = vmatprep.subr.mxu0 0.0
  %1354 = vmatpush1.msra.mxu0 0.0
  %1355 = vmatprep.subr.mxu0 0.0
  %1356 = vmatpush1.msra.mxu0 0.0
  %1357 = vmatprep.mubr.f32.mxu0 0.0
  %1358 = vmatmul.mubr.f32.gmra.mrb[0].mxu0 %v1291
  %v1359 = vpop.f32.mrb[0].mxu0
  %v1360 = vadd.f32 0.0, %v1359
  %v1361 = vpop.f32.mrb[0].mxu0
  %1362 = vdwg.mxu0
  %v1363 = vadd.f32 %v1287, %v1360
  %v1364 = vxor.u32 %v1363, 2147483648
  %v1365 = vmul.f32 %v1364, 1.442695
  %v1366 = vpow.pop %v1365
  %v1367 = vadd.f32 %v1366, 1.0
  %v1368 = vrcp.pop %v1367
  %v1369 = vmul.f32 1.0, %v1368
  %v1370 = vtanh.pop %v1363
  %v1371 = vmul.f32 %v1369, %v1280
  %1373 = vrot.lane.b32.xlu0 %v1370, 64
  %v1374 = vpop.permute.xlu0 %1373
  %v1376 = vmul.f32 %v1369, %v1374
  %1378 = vrot.lane.b32.xlu0 %v1376, 32
  %v1379 = vpop.permute.xlu0 %1378
  %v1381 = vadd.f32 %v1371, %v1379
  %v1382 = vtanh.pop %v1381
  %1384 = vrot.lane.b32.xlu0 %v1382, 64
  %v1385 = vpop.permute.xlu0 %1384
  %v1387 = vmul.f32 %v1369, %v1385
  %v1388 = vld [vmem:[%s401] sm:$0xff]
  %1390 = vrot.lane.b32.xlu0 %v1387, 32
  %v1391 = vpop.permute.xlu0 %1390
  %v1392 = vsel %vm192, %v1391, 0
  %1394 = vmatprep.subr.mxu0 0.0
  %1395 = vmatpush1.msra.mxu0 %v1187
  %1396 = vmatprep.subr.mxu0 0.0
  %1397 = vmatpush1.msra.mxu0 %v1188
  %1398 = vmatprep.subr.mxu0 0.0
  %1399 = vmatpush1.msra.mxu0 %v1189
  %1400 = vmatprep.subr.mxu0 0.0
  %1401 = vmatpush1.msra.mxu0 %v1190
  %1402 = vmatprep.subr.mxu0 0.0
  %1403 = vmatpush1.msra.mxu0 0.0
  %1404 = vmatprep.subr.mxu0 0.0
  %1405 = vmatpush1.msra.mxu0 0.0
  %1406 = vmatprep.subr.mxu0 0.0
  %1407 = vmatpush1.msra.mxu0 0.0
  %1408 = vmatprep.subr.mxu0 0.0
  %1409 = vmatpush1.msra.mxu0 0.0
  %1410 = vmatprep.subr.mxu0 0.0
  %1411 = vmatpush1.msra.mxu0 0.0
  %1412 = vmatprep.subr.mxu0 0.0
  %1413 = vmatpush1.msra.mxu0 0.0
  %1414 = vmatprep.subr.mxu0 0.0
  %1415 = vmatpush1.msra.mxu0 0.0
  %1416 = vmatprep.subr.mxu0 0.0
  %1417 = vmatpush1.msra.mxu0 0.0
  %1418 = vmatprep.subr.mxu0 0.0
  %1419 = vmatpush1.msra.mxu0 0.0
  %1420 = vmatprep.subr.mxu0 0.0
  %1421 = vmatpush1.msra.mxu0 0.0
  %1422 = vmatprep.subr.mxu0 0.0
  %1423 = vmatpush1.msra.mxu0 0.0
  %1424 = vmatprep.subr.mxu0 0.0
  %1425 = vmatpush1.msra.mxu0 0.0
  %1426 = vmatprep.subr.mxu0 0.0
  %1427 = vmatpush1.msra.mxu0 0.0
  %1428 = vmatprep.subr.mxu0 0.0
  %1429 = vmatpush1.msra.mxu0 0.0
  %1430 = vmatprep.subr.mxu0 0.0
  %1431 = vmatpush1.msra.mxu0 0.0
  %1432 = vmatprep.subr.mxu0 0.0
  %1433 = vmatpush1.msra.mxu0 0.0
  %1434 = vmatprep.subr.mxu0 0.0
  %1435 = vmatpush1.msra.mxu0 0.0
  %1436 = vmatprep.subr.mxu0 0.0
  %1437 = vmatpush1.msra.mxu0 0.0
  %1438 = vmatprep.subr.mxu0 0.0
  %1439 = vmatpush1.msra.mxu0 0.0
  %1440 = vmatprep.subr.mxu0 0.0
  %1441 = vmatpush1.msra.mxu0 0.0
  %1442 = vmatprep.subr.mxu0 0.0
  %1443 = vmatpush1.msra.mxu0 0.0
  %1444 = vmatprep.subr.mxu0 0.0
  %1445 = vmatpush1.msra.mxu0 0.0
  %1446 = vmatprep.subr.mxu0 0.0
  %1447 = vmatpush1.msra.mxu0 0.0
  %1448 = vmatprep.subr.mxu0 0.0
  %1449 = vmatpush1.msra.mxu0 0.0
  %1450 = vmatprep.subr.mxu0 0.0
  %1451 = vmatpush1.msra.mxu0 0.0
  %1452 = vmatprep.subr.mxu0 0.0
  %1453 = vmatpush1.msra.mxu0 0.0
  %1454 = vmatprep.subr.mxu0 0.0
  %1455 = vmatpush1.msra.mxu0 0.0
  %1456 = vmatprep.subr.mxu0 0.0
  %1457 = vmatpush1.msra.mxu0 0.0
  %1458 = vmatprep.mubr.f32.mxu0 0.0
  %1459 = vmatmul.mubr.f32.gmra.mrb[0].mxu0 %v1392
  %v1460 = vpop.f32.mrb[0].mxu0
  %v1461 = vadd.f32 0.0, %v1460
  %v1462 = vpop.f32.mrb[0].mxu0
  %1463 = vdwg.mxu0
  %v1464 = vadd.f32 %v1388, %v1461
  %v1465 = vxor.u32 %v1464, 2147483648
  %v1466 = vmul.f32 %v1465, 1.442695
  %v1467 = vpow.pop %v1466
  %v1468 = vadd.f32 %v1467, 1.0
  %v1469 = vrcp.pop %v1468
  %v1470 = vmul.f32 1.0, %v1469
  %v1471 = vtanh.pop %v1464
  %v1472 = vmul.f32 %v1470, %v1381
  %1474 = vrot.lane.b32.xlu0 %v1471, 64
  %v1475 = vpop.permute.xlu0 %1474
  %v1477 = vmul.f32 %v1470, %v1475
  %1479 = vrot.lane.b32.xlu0 %v1477, 32
  %v1480 = vpop.permute.xlu0 %1479
  %v1482 = vadd.f32 %v1472, %v1480
  %v1483 = vtanh.pop %v1482
  %1485 = vrot.lane.b32.xlu0 %v1483, 64
  %v1486 = vpop.permute.xlu0 %1485
  %v1488 = vmul.f32 %v1470, %v1486
  %v1489 = vld [vmem:[%s506] sm:$0xff]
  %1491 = vrot.lane.b32.xlu0 %v1488, 32
  %v1492 = vpop.permute.xlu0 %1491
  %v1493 = vsel %vm192, %v1492, 0
  %1495 = vmatprep.subr.mxu0 0.0
  %1496 = vmatpush1.msra.mxu0 %v1187
  %1497 = vmatprep.subr.mxu0 0.0
  %1498 = vmatpush1.msra.mxu0 %v1188
  %1499 = vmatprep.subr.mxu0 0.0
  %1500 = vmatpush1.msra.mxu0 %v1189
  %1501 = vmatprep.subr.mxu0 0.0
  %1502 = vmatpush1.msra.mxu0 %v1190
  %1503 = vmatprep.subr.mxu0 0.0
  %1504 = vmatpush1.msra.mxu0 0.0
  %1505 = vmatprep.subr.mxu0 0.0
  %1506 = vmatpush1.msra.mxu0 0.0
  %1507 = vmatprep.subr.mxu0 0.0
  %1508 = vmatpush1.msra.mxu0 0.0
  %1509 = vmatprep.subr.mxu0 0.0
  %1510 = vmatpush1.msra.mxu0 0.0
  %1511 = vmatprep.subr.mxu0 0.0
  %1512 = vmatpush1.msra.mxu0 0.0
  %1513 = vmatprep.subr.mxu0 0.0
  %1514 = vmatpush1.msra.mxu0 0.0
  %1515 = vmatprep.subr.mxu0 0.0
  %1516 = vmatpush1.msra.mxu0 0.0
  %1517 = vmatprep.subr.mxu0 0.0
  %1518 = vmatpush1.msra.mxu0 0.0
  %1519 = vmatprep.subr.mxu0 0.0
  %1520 = vmatpush1.msra.mxu0 0.0
  %1521 = vmatprep.subr.mxu0 0.0
  %1522 = vmatpush1.msra.mxu0 0.0
  %1523 = vmatprep.subr.mxu0 0.0
  %1524 = vmatpush1.msra.mxu0 0.0
  %1525 = vmatprep.subr.mxu0 0.0
  %1526 = vmatpush1.msra.mxu0 0.0
  %1527 = vmatprep.subr.mxu0 0.0
  %1528 = vmatpush1.msra.mxu0 0.0
  %1529 = vmatprep.subr.mxu0 0.0
  %1530 = vmatpush1.msra.mxu0 0.0
  %1531 = vmatprep.subr.mxu0 0.0
  %1532 = vmatpush1.msra.mxu0 0.0
  %1533 = vmatprep.subr.mxu0 0.0
  %1534 = vmatpush1.msra.mxu0 0.0
  %1535 = vmatprep.subr.mxu0 0.0
  %1536 = vmatpush1.msra.mxu0 0.0
  %1537 = vmatprep.subr.mxu0 0.0
  %1538 = vmatpush1.msra.mxu0 0.0
  %1539 = vmatprep.subr.mxu0 0.0
  %1540 = vmatpush1.msra.mxu0 0.0
  %1541 = vmatprep.subr.mxu0 0.0
  %1542 = vmatpush1.msra.mxu0 0.0
  %1543 = vmatprep.subr.mxu0 0.0
  %1544 = vmatpush1.msra.mxu0 0.0
  %1545 = vmatprep.subr.mxu0 0.0
  %1546 = vmatpush1.msra.mxu0 0.0
  %1547 = vmatprep.subr.mxu0 0.0
  %1548 = vmatpush1.msra.mxu0 0.0
  %1549 = vmatprep.subr.mxu0 0.0
  %1550 = vmatpush1.msra.mxu0 0.0
  %1551 = vmatprep.subr.mxu0 0.0
  %1552 = vmatpush1.msra.mxu0 0.0
  %1553 = vmatprep.subr.mxu0 0.0
  %1554 = vmatpush1.msra.mxu0 0.0
  %1555 = vmatprep.subr.mxu0 0.0
  %1556 = vmatpush1.msra.mxu0 0.0
  %1557 = vmatprep.subr.mxu0 0.0
  %1558 = vmatpush1.msra.mxu0 0.0
  %1559 = vmatprep.mubr.f32.mxu0 0.0
  %1560 = vmatmul.mubr.f32.gmra.mrb[0].mxu0 %v1493
  %v1561 = vpop.f32.mrb[0].mxu0
  %v1562 = vadd.f32 0.0, %v1561
  %v1563 = vpop.f32.mrb[0].mxu0
  %1564 = vdwg.mxu0
  %v1565 = vadd.f32 %v1489, %v1562
  %v1566 = vxor.u32 %v1565, 2147483648
  %v1567 = vmul.f32 %v1566, 1.442695
  %v1568 = vpow.pop %v1567
  %v1569 = vadd.f32 %v1568, 1.0
  %v1570 = vrcp.pop %v1569
  %v1571 = vmul.f32 1.0, %v1570
  %v1572 = vtanh.pop %v1565
  %v1573 = vmul.f32 %v1571, %v1482
  %1575 = vrot.lane.b32.xlu0 %v1572, 64
  %v1576 = vpop.permute.xlu0 %1575
  %v1578 = vmul.f32 %v1571, %v1576
  %1580 = vrot.lane.b32.xlu0 %v1578, 32
  %v1581 = vpop.permute.xlu0 %1580
  %v1583 = vadd.f32 %v1573, %v1581
  %v1584 = vtanh.pop %v1583
  %1586 = vrot.lane.b32.xlu0 %v1584, 64
  %v1587 = vpop.permute.xlu0 %1586
  %v1589 = vmul.f32 %v1571, %v1587
  %v1590 = vld [vmem:[%s611] sm:$0xff]
  %1592 = vrot.lane.b32.xlu0 %v1589, 32
  %v1593 = vpop.permute.xlu0 %1592
  %v1594 = vsel %vm192, %v1593, 0
  %1596 = vmatprep.subr.mxu0 0.0
  %1597 = vmatpush1.msra.mxu0 %v1187
  %1598 = vmatprep.subr.mxu0 0.0
  %1599 = vmatpush1.msra.mxu0 %v1188
  %1600 = vmatprep.subr.mxu0 0.0
  %1601 = vmatpush1.msra.mxu0 %v1189
  %1602 = vmatprep.subr.mxu0 0.0
  %1603 = vmatpush1.msra.mxu0 %v1190
  %1604 = vmatprep.subr.mxu0 0.0
  %1605 = vmatpush1.msra.mxu0 0.0
  %1606 = vmatprep.subr.mxu0 0.0
  %1607 = vmatpush1.msra.mxu0 0.0
  %1608 = vmatprep.subr.mxu0 0.0
  %1609 = vmatpush1.msra.mxu0 0.0
  %1610 = vmatprep.subr.mxu0 0.0
  %1611 = vmatpush1.msra.mxu0 0.0
  %1612 = vmatprep.subr.mxu0 0.0
  %1613 = vmatpush1.msra.mxu0 0.0
  %1614 = vmatprep.subr.mxu0 0.0
  %1615 = vmatpush1.msra.mxu0 0.0
  %1616 = vmatprep.subr.mxu0 0.0
  %1617 = vmatpush1.msra.mxu0 0.0
  %1618 = vmatprep.subr.mxu0 0.0
  %1619 = vmatpush1.msra.mxu0 0.0
  %1620 = vmatprep.subr.mxu0 0.0
  %1621 = vmatpush1.msra.mxu0 0.0
  %1622 = vmatprep.subr.mxu0 0.0
  %1623 = vmatpush1.msra.mxu0 0.0
  %1624 = vmatprep.subr.mxu0 0.0
  %1625 = vmatpush1.msra.mxu0 0.0
  %1626 = vmatprep.subr.mxu0 0.0
  %1627 = vmatpush1.msra.mxu0 0.0
  %1628 = vmatprep.subr.mxu0 0.0
  %1629 = vmatpush1.msra.mxu0 0.0
  %1630 = vmatprep.subr.mxu0 0.0
  %1631 = vmatpush1.msra.mxu0 0.0
  %1632 = vmatprep.subr.mxu0 0.0
  %1633 = vmatpush1.msra.mxu0 0.0
  %1634 = vmatprep.subr.mxu0 0.0
  %1635 = vmatpush1.msra.mxu0 0.0
  %1636 = vmatprep.subr.mxu0 0.0
  %1637 = vmatpush1.msra.mxu0 0.0
  %1638 = vmatprep.subr.mxu0 0.0
  %1639 = vmatpush1.msra.mxu0 0.0
  %1640 = vmatprep.subr.mxu0 0.0
  %1641 = vmatpush1.msra.mxu0 0.0
  %1642 = vmatprep.subr.mxu0 0.0
  %1643 = vmatpush1.msra.mxu0 0.0
  %1644 = vmatprep.subr.mxu0 0.0
  %1645 = vmatpush1.msra.mxu0 0.0
  %1646 = vmatprep.subr.mxu0 0.0
  %1647 = vmatpush1.msra.mxu0 0.0
  %1648 = vmatprep.subr.mxu0 0.0
  %1649 = vmatpush1.msra.mxu0 0.0
  %1650 = vmatprep.subr.mxu0 0.0
  %1651 = vmatpush1.msra.mxu0 0.0
  %1652 = vmatprep.subr.mxu0 0.0
  %1653 = vmatpush1.msra.mxu0 0.0
  %1654 = vmatprep.subr.mxu0 0.0
  %1655 = vmatpush1.msra.mxu0 0.0
  %1656 = vmatprep.subr.mxu0 0.0
  %1657 = vmatpush1.msra.mxu0 0.0
  %1658 = vmatprep.subr.mxu0 0.0
  %1659 = vmatpush1.msra.mxu0 0.0
  %1660 = vmatprep.mubr.f32.mxu0 0.0
  %1661 = vmatmul.mubr.f32.gmra.mrb[0].mxu0 %v1594
  %v1662 = vpop.f32.mrb[0].mxu0
  %v1663 = vadd.f32 0.0, %v1662
  %v1664 = vpop.f32.mrb[0].mxu0
  %1665 = vdwg.mxu0
  %v1666 = vadd.f32 %v1590, %v1663
  %v1667 = vxor.u32 %v1666, 2147483648
  %v1668 = vmul.f32 %v1667, 1.442695
  %v1669 = vpow.pop %v1668
  %v1670 = vadd.f32 %v1669, 1.0
  %v1671 = vrcp.pop %v1670
  %v1672 = vmul.f32 1.0, %v1671
  %v1673 = vtanh.pop %v1666
  %v1674 = vmul.f32 %v1672, %v1583
  %1676 = vrot.lane.b32.xlu0 %v1673, 64
  %v1677 = vpop.permute.xlu0 %1676
  %v1679 = vmul.f32 %v1672, %v1677
  %1681 = vrot.lane.b32.xlu0 %v1679, 32
  %v1682 = vpop.permute.xlu0 %1681
  %v1684 = vadd.f32 %v1674, %v1682
  %v1685 = vtanh.pop %v1684
  %1687 = vrot.lane.b32.xlu0 %v1685, 64
  %v1688 = vpop.permute.xlu0 %1687
  %v1690 = vmul.f32 %v1672, %v1688
  %v1691 = vld [vmem:[%s716] sm:$0xff]
  %1693 = vrot.lane.b32.xlu0 %v1690, 32
  %v1694 = vpop.permute.xlu0 %1693
  %v1695 = vsel %vm192, %v1694, 0
  %1697 = vmatprep.subr.mxu0 0.0
  %1698 = vmatpush1.msra.mxu0 %v1187
  %1699 = vmatprep.subr.mxu0 0.0
  %1700 = vmatpush1.msra.mxu0 %v1188
  %1701 = vmatprep.subr.mxu0 0.0
  %1702 = vmatpush1.msra.mxu0 %v1189
  %1703 = vmatprep.subr.mxu0 0.0
  %1704 = vmatpush1.msra.mxu0 %v1190
  %1705 = vmatprep.subr.mxu0 0.0
  %1706 = vmatpush1.msra.mxu0 0.0
  %1707 = vmatprep.subr.mxu0 0.0
  %1708 = vmatpush1.msra.mxu0 0.0
  %1709 = vmatprep.subr.mxu0 0.0
  %1710 = vmatpush1.msra.mxu0 0.0
  %1711 = vmatprep.subr.mxu0 0.0
  %1712 = vmatpush1.msra.mxu0 0.0
  %1713 = vmatprep.subr.mxu0 0.0
  %1714 = vmatpush1.msra.mxu0 0.0
  %1715 = vmatprep.subr.mxu0 0.0
  %1716 = vmatpush1.msra.mxu0 0.0
  %1717 = vmatprep.subr.mxu0 0.0
  %1718 = vmatpush1.msra.mxu0 0.0
  %1719 = vmatprep.subr.mxu0 0.0
  %1720 = vmatpush1.msra.mxu0 0.0
  %1721 = vmatprep.subr.mxu0 0.0
  %1722 = vmatpush1.msra.mxu0 0.0
  %1723 = vmatprep.subr.mxu0 0.0
  %1724 = vmatpush1.msra.mxu0 0.0
  %1725 = vmatprep.subr.mxu0 0.0
  %1726 = vmatpush1.msra.mxu0 0.0
  %1727 = vmatprep.subr.mxu0 0.0
  %1728 = vmatpush1.msra.mxu0 0.0
  %1729 = vmatprep.subr.mxu0 0.0
  %1730 = vmatpush1.msra.mxu0 0.0
  %1731 = vmatprep.subr.mxu0 0.0
  %1732 = vmatpush1.msra.mxu0 0.0
  %1733 = vmatprep.subr.mxu0 0.0
  %1734 = vmatpush1.msra.mxu0 0.0
  %1735 = vmatprep.subr.mxu0 0.0
  %1736 = vmatpush1.msra.mxu0 0.0
  %1737 = vmatprep.subr.mxu0 0.0
  %1738 = vmatpush1.msra.mxu0 0.0
  %1739 = vmatprep.subr.mxu0 0.0
  %1740 = vmatpush1.msra.mxu0 0.0
  %1741 = vmatprep.subr.mxu0 0.0
  %1742 = vmatpush1.msra.mxu0 0.0
  %1743 = vmatprep.subr.mxu0 0.0
  %1744 = vmatpush1.msra.mxu0 0.0
  %1745 = vmatprep.subr.mxu0 0.0
  %1746 = vmatpush1.msra.mxu0 0.0
  %1747 = vmatprep.subr.mxu0 0.0
  %1748 = vmatpush1.msra.mxu0 0.0
  %1749 = vmatprep.subr.mxu0 0.0
  %1750 = vmatpush1.msra.mxu0 0.0
  %1751 = vmatprep.subr.mxu0 0.0
  %1752 = vmatpush1.msra.mxu0 0.0
  %1753 = vmatprep.subr.mxu0 0.0
  %1754 = vmatpush1.msra.mxu0 0.0
  %1755 = vmatprep.subr.mxu0 0.0
  %1756 = vmatpush1.msra.mxu0 0.0
  %1757 = vmatprep.subr.mxu0 0.0
  %1758 = vmatpush1.msra.mxu0 0.0
  %1759 = vmatprep.subr.mxu0 0.0
  %1760 = vmatpush1.msra.mxu0 0.0
  %1761 = vmatprep.mubr.f32.mxu0 0.0
  %1762 = vmatmul.mubr.f32.gmra.mrb[0].mxu0 %v1695
  %v1763 = vpop.f32.mrb[0].mxu0
  %v1764 = vadd.f32 0.0, %v1763
  %v1765 = vpop.f32.mrb[0].mxu0
  %1766 = vdwg.mxu0
  %v1767 = vadd.f32 %v1691, %v1764
  %v1768 = vxor.u32 %v1767, 2147483648
  %v1769 = vmul.f32 %v1768, 1.442695
  %v1770 = vpow.pop %v1769
  %v1771 = vadd.f32 %v1770, 1.0
  %v1772 = vrcp.pop %v1771
  %v1773 = vmul.f32 1.0, %v1772
  %v1774 = vtanh.pop %v1767
  %v1775 = vmul.f32 %v1773, %v1684
  %1777 = vrot.lane.b32.xlu0 %v1774, 64
  %v1778 = vpop.permute.xlu0 %1777
  %v1780 = vmul.f32 %v1773, %v1778
  %1782 = vrot.lane.b32.xlu0 %v1780, 32
  %v1783 = vpop.permute.xlu0 %1782
  %v1785 = vadd.f32 %v1775, %v1783
  %v1786 = vtanh.pop %v1785
  %1788 = vrot.lane.b32.xlu0 %v1786, 64
  %v1789 = vpop.permute.xlu0 %1788
  %v1791 = vmul.f32 %v1773, %v1789
  %v1792 = vld [vmem:[%s821] sm:$0xff]
  %1794 = vrot.lane.b32.xlu0 %v1791, 32
  %v1795 = vpop.permute.xlu0 %1794
  %v1796 = vsel %vm192, %v1795, 0
  %1798 = vmatprep.subr.mxu0 0.0
  %1799 = vmatpush1.msra.mxu0 %v1187
  %1800 = vmatprep.subr.mxu0 0.0
  %1801 = vmatpush1.msra.mxu0 %v1188
  %1802 = vmatprep.subr.mxu0 0.0
  %1803 = vmatpush1.msra.mxu0 %v1189
  %1804 = vmatprep.subr.mxu0 0.0
  %1805 = vmatpush1.msra.mxu0 %v1190
  %1806 = vmatprep.subr.mxu0 0.0
  %1807 = vmatpush1.msra.mxu0 0.0
  %1808 = vmatprep.subr.mxu0 0.0
  %1809 = vmatpush1.msra.mxu0 0.0
  %1810 = vmatprep.subr.mxu0 0.0
  %1811 = vmatpush1.msra.mxu0 0.0
  %1812 = vmatprep.subr.mxu0 0.0
  %1813 = vmatpush1.msra.mxu0 0.0
  %1814 = vmatprep.subr.mxu0 0.0
  %1815 = vmatpush1.msra.mxu0 0.0
  %1816 = vmatprep.subr.mxu0 0.0
  %1817 = vmatpush1.msra.mxu0 0.0
  %1818 = vmatprep.subr.mxu0 0.0
  %1819 = vmatpush1.msra.mxu0 0.0
  %1820 = vmatprep.subr.mxu0 0.0
  %1821 = vmatpush1.msra.mxu0 0.0
  %1822 = vmatprep.subr.mxu0 0.0
  %1823 = vmatpush1.msra.mxu0 0.0
  %1824 = vmatprep.subr.mxu0 0.0
  %1825 = vmatpush1.msra.mxu0 0.0
  %1826 = vmatprep.subr.mxu0 0.0
  %1827 = vmatpush1.msra.mxu0 0.0
  %1828 = vmatprep.subr.mxu0 0.0
  %1829 = vmatpush1.msra.mxu0 0.0
  %1830 = vmatprep.subr.mxu0 0.0
  %1831 = vmatpush1.msra.mxu0 0.0
  %1832 = vmatprep.subr.mxu0 0.0
  %1833 = vmatpush1.msra.mxu0 0.0
  %1834 = vmatprep.subr.mxu0 0.0
  %1835 = vmatpush1.msra.mxu0 0.0
  %1836 = vmatprep.subr.mxu0 0.0
  %1837 = vmatpush1.msra.mxu0 0.0
  %1838 = vmatprep.subr.mxu0 0.0
  %1839 = vmatpush1.msra.mxu0 0.0
  %1840 = vmatprep.subr.mxu0 0.0
  %1841 = vmatpush1.msra.mxu0 0.0
  %1842 = vmatprep.subr.mxu0 0.0
  %1843 = vmatpush1.msra.mxu0 0.0
  %1844 = vmatprep.subr.mxu0 0.0
  %1845 = vmatpush1.msra.mxu0 0.0
  %1846 = vmatprep.subr.mxu0 0.0
  %1847 = vmatpush1.msra.mxu0 0.0
  %1848 = vmatprep.subr.mxu0 0.0
  %1849 = vmatpush1.msra.mxu0 0.0
  %1850 = vmatprep.subr.mxu0 0.0
  %1851 = vmatpush1.msra.mxu0 0.0
  %1852 = vmatprep.subr.mxu0 0.0
  %1853 = vmatpush1.msra.mxu0 0.0
  %1854 = vmatprep.subr.mxu0 0.0
  %1855 = vmatpush1.msra.mxu0 0.0
  %1856 = vmatprep.subr.mxu0 0.0
  %1857 = vmatpush1.msra.mxu0 0.0
  %1858 = vmatprep.subr.mxu0 0.0
  %1859 = vmatpush1.msra.mxu0 0.0
  %1860 = vmatprep.subr.mxu0 0.0
  %1861 = vmatpush1.msra.mxu0 0.0
  %1862 = vmatprep.mubr.f32.mxu0 0.0
  %1863 = vmatmul.mubr.f32.gmra.mrb[0].mxu0 %v1796
  %v1864 = vpop.f32.mrb[0].mxu0
  %v1865 = vadd.f32 0.0, %v1864
  %v1866 = vpop.f32.mrb[0].mxu0
  %1867 = vdwg.mxu0
  %v1868 = vadd.f32 %v1792, %v1865
  %v1869 = vxor.u32 %v1868, 2147483648
  %v1870 = vmul.f32 %v1869, 1.442695
  %v1871 = vpow.pop %v1870
  %v1872 = vadd.f32 %v1871, 1.0
  %v1873 = vrcp.pop %v1872
  %v1874 = vmul.f32 1.0, %v1873
  %v1875 = vtanh.pop %v1868
  %v1876 = vmul.f32 %v1874, %v1785
  %1878 = vrot.lane.b32.xlu0 %v1875, 64
  %v1879 = vpop.permute.xlu0 %1878
  %v1881 = vmul.f32 %v1874, %v1879
  %1883 = vrot.lane.b32.xlu0 %v1881, 32
  %v1884 = vpop.permute.xlu0 %1883
  %v1886 = vadd.f32 %v1876, %v1884
  %v1887 = vtanh.pop %v1886
  %1889 = vrot.lane.b32.xlu0 %v1887, 64
  %v1890 = vpop.permute.xlu0 %1889
  %v1892 = vmul.f32 %v1874, %v1890
  %v1893 = vld [vmem:[%s926] sm:$0xff]
  %1895 = vrot.lane.b32.xlu0 %v1892, 32
  %v1896 = vpop.permute.xlu0 %1895
  %v1897 = vsel %vm192, %v1896, 0
  %1899 = vmatprep.subr.mxu0 0.0
  %1900 = vmatpush1.msra.mxu0 %v1187
  %1901 = vmatprep.subr.mxu0 0.0
  %1902 = vmatpush1.msra.mxu0 %v1188
  %1903 = vmatprep.subr.mxu0 0.0
  %1904 = vmatpush1.msra.mxu0 %v1189
  %1905 = vmatprep.subr.mxu0 0.0
  %1906 = vmatpush1.msra.mxu0 %v1190
  %1907 = vmatprep.subr.mxu0 0.0
  %1908 = vmatpush1.msra.mxu0 0.0
  %1909 = vmatprep.subr.mxu0 0.0
  %1910 = vmatpush1.msra.mxu0 0.0
  %1911 = vmatprep.subr.mxu0 0.0
  %1912 = vmatpush1.msra.mxu0 0.0
  %1913 = vmatprep.subr.mxu0 0.0
  %1914 = vmatpush1.msra.mxu0 0.0
  %1915 = vmatprep.subr.mxu0 0.0
  %1916 = vmatpush1.msra.mxu0 0.0
  %1917 = vmatprep.subr.mxu0 0.0
  %1918 = vmatpush1.msra.mxu0 0.0
  %1919 = vmatprep.subr.mxu0 0.0
  %1920 = vmatpush1.msra.mxu0 0.0
  %1921 = vmatprep.subr.mxu0 0.0
  %1922 = vmatpush1.msra.mxu0 0.0
  %1923 = vmatprep.subr.mxu0 0.0
  %1924 = vmatpush1.msra.mxu0 0.0
  %1925 = vmatprep.subr.mxu0 0.0
  %1926 = vmatpush1.msra.mxu0 0.0
  %1927 = vmatprep.subr.mxu0 0.0
  %1928 = vmatpush1.msra.mxu0 0.0
  %1929 = vmatprep.subr.mxu0 0.0
  %1930 = vmatpush1.msra.mxu0 0.0
  %1931 = vmatprep.subr.mxu0 0.0
  %1932 = vmatpush1.msra.mxu0 0.0
  %1933 = vmatprep.subr.mxu0 0.0
  %1934 = vmatpush1.msra.mxu0 0.0
  %1935 = vmatprep.subr.mxu0 0.0
  %1936 = vmatpush1.msra.mxu0 0.0
  %1937 = vmatprep.subr.mxu0 0.0
  %1938 = vmatpush1.msra.mxu0 0.0
  %1939 = vmatprep.subr.mxu0 0.0
  %1940 = vmatpush1.msra.mxu0 0.0
  %1941 = vmatprep.subr.mxu0 0.0
  %1942 = vmatpush1.msra.mxu0 0.0
  %1943 = vmatprep.subr.mxu0 0.0
  %1944 = vmatpush1.msra.mxu0 0.0
  %1945 = vmatprep.subr.mxu0 0.0
  %1946 = vmatpush1.msra.mxu0 0.0
  %1947 = vmatprep.subr.mxu0 0.0
  %1948 = vmatpush1.msra.mxu0 0.0
  %1949 = vmatprep.subr.mxu0 0.0
  %1950 = vmatpush1.msra.mxu0 0.0
  %1951 = vmatprep.subr.mxu0 0.0
  %1952 = vmatpush1.msra.mxu0 0.0
  %1953 = vmatprep.subr.mxu0 0.0
  %1954 = vmatpush1.msra.mxu0 0.0
  %1955 = vmatprep.subr.mxu0 0.0
  %1956 = vmatpush1.msra.mxu0 0.0
  %1957 = vmatprep.subr.mxu0 0.0
  %1958 = vmatpush1.msra.mxu0 0.0
  %1959 = vmatprep.subr.mxu0 0.0
  %1960 = vmatpush1.msra.mxu0 0.0
  %1961 = vmatprep.subr.mxu0 0.0
  %1962 = vmatpush1.msra.mxu0 0.0
  %1963 = vmatprep.mubr.f32.mxu0 0.0
  %1964 = vmatmul.mubr.f32.gmra.mrb[0].mxu0 %v1897
  %v1965 = vpop.f32.mrb[0].mxu0
  %v1966 = vadd.f32 0.0, %v1965
  %v1967 = vpop.f32.mrb[0].mxu0
  %1968 = vdwg.mxu0
  %v1969 = vadd.f32 %v1893, %v1966
  %v1970 = vxor.u32 %v1969, 2147483648
  %v1971 = vmul.f32 %v1970, 1.442695
  %v1972 = vpow.pop %v1971
  %v1973 = vadd.f32 %v1972, 1.0
  %v1974 = vrcp.pop %v1973
  %v1975 = vmul.f32 1.0, %v1974
  %v1976 = vtanh.pop %v1969
  %v1977 = vmul.f32 %v1975, %v1886
  %1979 = vrot.lane.b32.xlu0 %v1976, 64
  %v1980 = vpop.permute.xlu0 %1979
  %v1982 = vmul.f32 %v1975, %v1980
  %1984 = vrot.lane.b32.xlu0 %v1982, 32
  %v1985 = vpop.permute.xlu0 %1984
  %v1987 = vadd.f32 %v1977, %v1985
  %v1988 = vtanh.pop %v1987
  %1990 = vrot.lane.b32.xlu0 %v1988, 64
  %v1991 = vpop.permute.xlu0 %1990
  %v1993 = vmul.f32 %v1975, %v1991
  %v1994 = vld [vmem:[%s7] sm:$0xff]
  %v1995 = vld [vmem:[%s7 + $0x8] sm:$0xff]
  %v1996 = vld [vmem:[%s7 + $0x10] sm:$0xff]
  %v1997 = vld [vmem:[%s7 + $0x18] sm:$0xff]
  %v1998 = vld [vmem:[%s8] sm:$0x1]
  %v2000 = vlaneseq
  %v2001 = vshrl.u32 %v2000, 7
  %v2002 = vsub.s32 0, %v2001
  %v2003 = vrot.slane %v1998, %v2002
  %2006 = vrot.lane.b32.xlu0 %v1993, 32
  %v2007 = vpop.permute.xlu0 %2006
  %v2008 = vsel %vm192, %v2007, 0
  %2010 = vmatprep.subr.mxu0 0.0
  %2011 = vmatpush1.msra.mxu0 %v1994
  %2012 = vmatprep.subr.mxu0 0.0
  %2013 = vmatpush1.msra.mxu0 %v1995
  %2014 = vmatprep.subr.mxu0 0.0
  %2015 = vmatpush1.msra.mxu0 %v1996
  %2016 = vmatprep.subr.mxu0 0.0
  %2017 = vmatpush1.msra.mxu0 %v1997
  %2018 = vmatprep.subr.mxu0 0.0
  %2019 = vmatpush1.msra.mxu0 0.0
  %2020 = vmatprep.subr.mxu0 0.0
  %2021 = vmatpush1.msra.mxu0 0.0
  %2022 = vmatprep.subr.mxu0 0.0
  %2023 = vmatpush1.msra.mxu0 0.0
  %2024 = vmatprep.subr.mxu0 0.0
  %2025 = vmatpush1.msra.mxu0 0.0
  %2026 = vmatprep.subr.mxu0 0.0
  %2027 = vmatpush1.msra.mxu0 0.0
  %2028 = vmatprep.subr.mxu0 0.0
  %2029 = vmatpush1.msra.mxu0 0.0
  %2030 = vmatprep.subr.mxu0 0.0
  %2031 = vmatpush1.msra.mxu0 0.0
  %2032 = vmatprep.subr.mxu0 0.0
  %2033 = vmatpush1.msra.mxu0 0.0
  %2034 = vmatprep.subr.mxu0 0.0
  %2035 = vmatpush1.msra.mxu0 0.0
  %2036 = vmatprep.subr.mxu0 0.0
  %2037 = vmatpush1.msra.mxu0 0.0
  %2038 = vmatprep.subr.mxu0 0.0
  %2039 = vmatpush1.msra.mxu0 0.0
  %2040 = vmatprep.subr.mxu0 0.0
  %2041 = vmatpush1.msra.mxu0 0.0
  %2042 = vmatprep.subr.mxu0 0.0
  %2043 = vmatpush1.msra.mxu0 0.0
  %2044 = vmatprep.subr.mxu0 0.0
  %2045 = vmatpush1.msra.mxu0 0.0
  %2046 = vmatprep.subr.mxu0 0.0
  %2047 = vmatpush1.msra.mxu0 0.0
  %2048 = vmatprep.subr.mxu0 0.0
  %2049 = vmatpush1.msra.mxu0 0.0
  %2050 = vmatprep.subr.mxu0 0.0
  %2051 = vmatpush1.msra.mxu0 0.0
  %2052 = vmatprep.subr.mxu0 0.0
  %2053 = vmatpush1.msra.mxu0 0.0
  %2054 = vmatprep.subr.mxu0 0.0
  %2055 = vmatpush1.msra.mxu0 0.0
  %2056 = vmatprep.subr.mxu0 0.0
  %2057 = vmatpush1.msra.mxu0 0.0
  %2058 = vmatprep.subr.mxu0 0.0
  %2059 = vmatpush1.msra.mxu0 0.0
  %2060 = vmatprep.subr.mxu0 0.0
  %2061 = vmatpush1.msra.mxu0 0.0
  %2062 = vmatprep.subr.mxu0 0.0
  %2063 = vmatpush1.msra.mxu0 0.0
  %2064 = vmatprep.subr.mxu0 0.0
  %2065 = vmatpush1.msra.mxu0 0.0
  %2066 = vmatprep.subr.mxu0 0.0
  %2067 = vmatpush1.msra.mxu0 0.0
  %2068 = vmatprep.subr.mxu0 0.0
  %2069 = vmatpush1.msra.mxu0 0.0
  %2070 = vmatprep.subr.mxu0 0.0
  %2071 = vmatpush1.msra.mxu0 0.0
  %2072 = vmatprep.subr.mxu0 0.0
  %2073 = vmatpush1.msra.mxu0 0.0
  %2074 = vmatprep.mubr.f32.mxu0 0.0
  %2075 = vmatmul.mubr.f32.gmra.mrb[0].mxu0 %v2008
  %v2076 = vpop.f32.mrb[0].mxu0
  %v2077 = vadd.f32 %v2003, %v2076
  %v2078 = vpop.f32.mrb[0].mxu0
  %2079 = vdwg.mxu0
  %vm2080 = vcmask 23552
  %2081 = vst.msk [vmem:[%s9] sm:$0xff] %vm2080, %v2077
  // Predicated region
  $region38: #{lstm_classifier_forward.1} parent=0 // pred_check
    _
  $region39: #{lstm_classifier_forward.1} parent=0 // pred_check_branch
    %2083 = sbr.rel (0) target = $region41
  $region40: #{lstm_classifier_forward.1} parent=0 // pred_region
    _
  $region41: #{lstm_classifier_forward.1} parent=0 // pred_fallthru
    _
  // Predicated region
  $region42: #{lstm_classifier_forward.1} parent=0 // pred_check
    _
  $region43: #{lstm_classifier_forward.1} parent=0 // pred_check_branch
    %2085 = sbr.rel (0) target = $region45
  $region44: #{lstm_classifier_forward.1} parent=0 // pred_region
    _
  $region45: #{lstm_classifier_forward.1} parent=0 // pred_fallthru
    _

</llo_original>
